<compile_context>
chip_gen: v6e
topology: v6e:2x2x1
jax: 0.10.0
libtpu: 0.0.40
codegen_flags: <defaults>
</compile_context>

<pallas_src>
import functools

import jax
import jax.numpy as jnp
from jax import lax
from jax.experimental import pallas as pl
from jax.experimental.pallas import tpu as pltpu


def _bigru_kernel(T, TB, H,
                  x_ref,      # [T*TB, D]   time-major flattened batch tile
                  wih_ref,    # [D, 6H]     fused input-to-hidden weights
                  whh_ref,    # [2H, 6H]    block-diagonal fused recurrent weights
                  bpre_ref,   # [1, 6H]     b_ih (+ b_hh of r,z) pre-folded
                  bhn_ref,    # [1, 2H]     b_hh of the n gate (kept separate)
                  steps_ref,  # [T, TB, 2H] per-STEP hidden states (both dirs)
                  hn_ref):    # [TB, 2H]    final hidden [h_fwd | h_rev]
    H2 = 2 * H
    G = 6 * H

    # Hoisted input-to-hidden matmul: all timesteps, both directions, one dot.
    xg = jnp.dot(x_ref[...], wih_ref[...],
                 preferred_element_type=jnp.float32) + bpre_ref[...]   # [T*TB, 6H]

    # Time-major layout => per-step rows are contiguous static slices
    # (no per-(b,t) row-gather / XLU shuffle prologue).
    rows = [xg[t * TB:(t + 1) * TB, :] for t in range(T)]              # T x [TB, 6H]

    # Forward lanes consume x_t, reverse lanes consume x_{T-1-t}.  The select
    # has no h-dependence, so it is hoisted fully out of the recurrence.
    col = lax.broadcasted_iota(jnp.int32, (TB, G), 1)
    rev_lane = (col % H2) >= H
    xg_steps = [jnp.where(rev_lane, rows[T - 1 - t], rows[t]) for t in range(T)]

    whh = whh_ref[...]                                  # hoisted out of the loop
    bhn = jnp.broadcast_to(bhn_ref[...], (TB, H2))      # hoisted broadcast

    h = jnp.zeros((TB, H2), jnp.float32)                # [h_fwd | h_rev]
    # Fully unrolled time loop with static indices (T is small and static).
    for t in range(T):
        if t == 0:
            hg = jnp.zeros((TB, G), jnp.float32)        # h0 == 0: skip the dot
        else:
            hg = jnp.dot(h, whh, preferred_element_type=jnp.float32)   # [TB, 6H]
        xg_t = xg_steps[t]
        rz = jax.nn.sigmoid(xg_t[:, :2 * H2] + hg[:, :2 * H2])  # one EUP slab
        r = rz[:, :H2]
        z = rz[:, H2:]
        n = jnp.tanh(xg_t[:, 2 * H2:] + r * (hg[:, 2 * H2:] + bhn))
        h = (1.0 - z) * n + z * h
        # Per-step aligned full-row store at a static major index: off the
        # h-dependence chain (hides under the next step's recurrent dot) and
        # bounds live vregs (no outs list / concat epilogue).
        steps_ref[t] = h

    # Final hidden: fwd final (after x_{T-1}) | rev final (after x_0).
    hn_ref[...] = h


def pack_gru_params(params):
    """Pack per-direction GRU weights into the fused gate-major layout.

    Column layout of every 6H-wide array: [r_f r_r | z_f z_r | n_f n_r].
    Done once, outside the per-call path.
    """
    H = params["whh_f"].shape[0]

    def interleave(a_f, a_r):            # [..., 3H] x2 -> [..., 6H]
        parts = []
        for g in range(3):
            parts.append(a_f[..., g * H:(g + 1) * H])
            parts.append(a_r[..., g * H:(g + 1) * H])
        return jnp.concatenate(parts, axis=-1)

    wih = interleave(params["wih_f"], params["wih_r"])           # [D, 6H]

    zero = jnp.zeros((H, H), jnp.float32)

    def gate_block(cf, cr):              # [H,H] x2 -> [2H, 2H] block-diag
        return jnp.concatenate(
            [jnp.concatenate([cf, zero], axis=0),    # fwd gate col <- h_fwd rows
             jnp.concatenate([zero, cr], axis=0)],   # rev gate col <- h_rev rows
            axis=1)

    whh_f, whh_r = params["whh_f"], params["whh_r"]
    whh = jnp.concatenate(
        [gate_block(whh_f[:, g * H:(g + 1) * H], whh_r[:, g * H:(g + 1) * H])
         for g in range(3)], axis=1)                              # [2H, 6H]

    bih = interleave(params["bih_f"], params["bih_r"])            # [1, 6H]
    bhh = interleave(params["bhh_f"], params["bhh_r"])            # [1, 6H]
    # Fold b_hh of the r/z gates into the hoisted input gates; keep the
    # n-gate b_hh separate (it sits inside the r * (...) term).
    bpre = bih + jnp.concatenate(
        [bhh[:, :4 * H], jnp.zeros((1, 2 * H), jnp.float32)], axis=1)
    bhn = bhh[:, 4 * H:]                                          # [1, 2H]
    return {"wih": wih, "whh": whh, "bpre": bpre, "bhn": bhn}


@jax.jit
def encode_birnn_forward(x, packed):
    """x: [B, T, D] float32 -> (feature [B, T, 2H], global_feature [B*2*H])."""
    B, T, D = x.shape
    H = packed["bhn"].shape[1] // 2
    H2 = 2 * H

    # Batch tile: == B for tiny batches, otherwise a multiple of 8 sublanes.
    # VMEM note (v7x): the hoisted xg slab is TB*T*6H*4 bytes per grid step;
    # keep TB so that it (plus double-buffered x/out blocks) stays well under
    # the ~32 MiB scoped default of v7x's 64 MiB VMEM; v5e/v6e afford ~2x.
    TB = B if B <= 8 else 8
    assert B % TB == 0, "batch must be divisible by the batch tile"
    nb = B // TB

    # Layout plumbing (negligible XLA work at these sizes): per batch tile,
    # time-major flattened input so the kernel's per-step rows are contiguous.
    x_blk = (jnp.transpose(x, (1, 0, 2))            # [T, B, D] time-major
             .reshape(T, nb, TB, D)
             .transpose(1, 0, 2, 3)
             .reshape(nb, T * TB, D))               # [nb, T*TB, D]

    kernel = functools.partial(_bigru_kernel, T, TB, H)

    steps, hn = pl.pallas_call(
        kernel,
        grid=(nb,),
        out_shape=(jax.ShapeDtypeStruct((T, B, H2), jnp.float32),
                   jax.ShapeDtypeStruct((B, H2), jnp.float32)),
        in_specs=[
            pl.BlockSpec((None, T * TB, D), lambda i: (i, 0, 0)),   # x tile
            pl.BlockSpec((D, 6 * H), lambda i: (0, 0)),             # wih
            pl.BlockSpec((H2, 6 * H), lambda i: (0, 0)),            # whh
            pl.BlockSpec((1, 6 * H), lambda i: (0, 0)),             # bpre
            pl.BlockSpec((1, H2), lambda i: (0, 0)),                # bhn
        ],
        out_specs=(
            pl.BlockSpec((T, TB, H2), lambda i: (0, i, 0)),         # per-step h
            pl.BlockSpec((TB, H2), lambda i: (i, 0)),               # final h
        ),
        compiler_params=pltpu.CompilerParams(
            dimension_semantics=("parallel",)),    # batch tiles are independent
    )(x_blk, packed["wih"], packed["whh"], packed["bpre"], packed["bhn"])

    # De-interleave the per-step slab into PyTorch's output layout.  Step t
    # holds [fwd_out(t) | rev hidden after consuming x_{T-1-t}], so only the
    # reverse half needs a time flip.  Tiny wrapper-side layout plumbing.
    fwd = steps[:, :, :H]                      # [T, B, H] already in time order
    rev = steps[::-1, :, H:]                   # flip step order -> time order
    feature = jnp.concatenate([fwd, rev], axis=-1).transpose(1, 0, 2)  # [B,T,2H]
    global_feature = hn.reshape(-1)            # == hn.permute(1,0,2).reshape(-1)
    return feature, global_feature


def init_params(key, dim_in, hidden):
    """Deterministic PyTorch-style GRU init: U(-1/sqrt(H), 1/sqrt(H))."""
    k = 1.0 / jnp.sqrt(jnp.float32(hidden))
    keys = jax.random.split(key, 8)

    def u(kk, shape):
        return jax.random.uniform(kk, shape, jnp.float32, minval=-k, maxval=k)

    return {
        # stored transposed relative to PyTorch ([3H, D] -> [D, 3H], etc.),
        # gate column order [r, z, n] per direction.
        "wih_f": u(keys[0], (dim_in, 3 * hidden)),
        "whh_f": u(keys[1], (hidden, 3 * hidden)),
        "bih_f": u(keys[2], (1, 3 * hidden)),
        "bhh_f": u(keys[3], (1, 3 * hidden)),
        "wih_r": u(keys[4], (dim_in, 3 * hidden)),
        "whh_r": u(keys[5], (hidden, 3 * hidden)),
        "bih_r": u(keys[6], (1, 3 * hidden)),
        "bhh_r": u(keys[7], (1, 3 * hidden)),
    }


def _ref_forward(x, params):
    """Pure-JAX reference of the same bidirectional GRU (for sanity check)."""
    B, T, D = x.shape
    H = params["whh_f"].shape[0]
    hp = lax.Precision.HIGHEST

    def cell(x_t, h, wih, whh, bih, bhh):
        xg = jnp.dot(x_t, wih, precision=hp) + bih[0]
        hg = jnp.dot(h, whh, precision=hp) + bhh[0]
        r = jax.nn.sigmoid(xg[:, :H] + hg[:, :H])
        z = jax.nn.sigmoid(xg[:, H:2 * H] + hg[:, H:2 * H])
        n = jnp.tanh(xg[:, 2 * H:] + r * hg[:, 2 * H:])
        return (1.0 - z) * n + z * h

    h_f = jnp.zeros((B, H), jnp.float32)
    h_r = jnp.zeros((B, H), jnp.float32)
    outs_f, outs_r = [], [None] * T
    for t in range(T):
        h_f = cell(x[:, t], h_f, params["wih_f"], params["whh_f"],
                   params["bih_f"], params["bhh_f"])
        outs_f.append(h_f)
    for t in range(T - 1, -1, -1):
        h_r = cell(x[:, t], h_r, params["wih_r"], params["whh_r"],
                   params["bih_r"], params["bhh_r"])
        outs_r[t] = h_r
    out = jnp.stack(
        [jnp.concatenate([outs_f[t], outs_r[t]], -1) for t in range(T)], axis=1)
    hn = jnp.stack([h_f, h_r], axis=0)
    return out, jnp.transpose(hn, (1, 0, 2)).reshape(-1)


if __name__ == "__main__":
    # Small shapes consistent with the module: dim_in=16, lstm_out=64 -> H=32.
    B, T, D, H = 2, 8, 16, 32

    key = jax.random.PRNGKey(0)
    kx, kp = jax.random.split(key)
    x = jax.random.normal(kx, (B, T, D), dtype=jnp.float32)
    params = init_params(kp, D, H)
    packed = pack_gru_params(params)     # one-time weight packing

    feature, global_feature = jax.block_until_ready(
        encode_birnn_forward(x, packed))

    assert feature.shape == (B, T, 2 * H)
    assert global_feature.shape == (B * 2 * H,)

    # Sanity check against a pure-JAX reference.  Tolerance stays at 1e-2
    # because the in-kernel f32 dots use the default MXU decomposition while
    # the reference runs at HIGHEST precision; the error compounds over the
    # 8-step recurrence.
    ref_feat, ref_gf = _ref_forward(x, params)
    assert jnp.allclose(feature, ref_feat, atol=1e-2, rtol=1e-2)
    assert jnp.allclose(global_feature, ref_gf, atol=1e-2, rtol=1e-2)

    print("KERNEL_OK")
</pallas_src>

<mosaic_0001>
module attributes {stable_mosaic.version = 11 : i64} {
  func.func @_bigru_kernel(%arg0: i32, %arg1: memref<1x16x16xf32, #tpu.memory_space<vmem>>, %arg2: memref<16x192xf32, #tpu.memory_space<vmem>>, %arg3: memref<64x192xf32, #tpu.memory_space<vmem>>, %arg4: memref<1x192xf32, #tpu.memory_space<vmem>>, %arg5: memref<1x64xf32, #tpu.memory_space<vmem>>, %arg6: memref<8x2x64xf32, #tpu.memory_space<vmem>>, %arg7: memref<2x64xf32, #tpu.memory_space<vmem>>) attributes {dimension_semantics = [#tpu.dimension_semantics<parallel>], iteration_bounds = array<i64: 1>, scalar_prefetch = 0 : i64, scratch_operands = 0 : i64, tpu.core_type = #tpu.core_type<tc>, window_params = [{transform_indices = @transform_0, window_bounds = array<i64: 1, 16, 16>}, {pipeline_mode = #tpu.pipeline_mode<synchronous>, transform_indices = @transform_1, window_bounds = array<i64: 16, 192>}, {pipeline_mode = #tpu.pipeline_mode<synchronous>, transform_indices = @transform_2, window_bounds = array<i64: 64, 192>}, {pipeline_mode = #tpu.pipeline_mode<synchronous>, transform_indices = @transform_3, window_bounds = array<i64: 1, 192>}, {pipeline_mode = #tpu.pipeline_mode<synchronous>, transform_indices = @transform_4, window_bounds = array<i64: 1, 64>}, {transform_indices = @transform_5, window_bounds = array<i64: 8, 2, 64>}, {transform_indices = @transform_6, window_bounds = array<i64: 2, 64>}]} {
    %c0 = arith.constant 0 : index
    %c0_0 = arith.constant 0 : index
    %c0_1 = arith.constant 0 : index
    %0 = vector.load %arg1[%c0, %c0_0, %c0_1] : memref<1x16x16xf32, #tpu.memory_space<vmem>>, vector<1x16x16xf32>
    %1 = vector.shape_cast %0 : vector<1x16x16xf32> to vector<16x16xf32>
    %c0_2 = arith.constant 0 : index
    %c0_3 = arith.constant 0 : index
    %2 = vector.load %arg2[%c0_2, %c0_3] : memref<16x192xf32, #tpu.memory_space<vmem>>, vector<16x192xf32>
    %cst = arith.constant dense<0.000000e+00> : vector<16x192xf32>
    %3 = tpu.matmul %1, %2, %cst {dimension_numbers = #tpu.dot_dimension_numbers<[1], [0], [0], [1], [0, 0, 1, 1], [], []>} : vector<16x16xf32>, vector<16x192xf32>, vector<16x192xf32> -> vector<16x192xf32>
    %c0_4 = arith.constant 0 : index
    %c0_5 = arith.constant 0 : index
    %4 = vector.load %arg4[%c0_4, %c0_5] : memref<1x192xf32, #tpu.memory_space<vmem>>, vector<1x192xf32>
    %5 = vector.broadcast %4 : vector<1x192xf32> to vector<16x192xf32>
    %6 = arith.addf %3, %5 : vector<16x192xf32>
    %7 = vector.extract_strided_slice %6 {offsets = [0, 0], sizes = [2, 192], strides = [1, 1]} : vector<16x192xf32> to vector<2x192xf32>
    %8 = vector.extract_strided_slice %6 {offsets = [2, 0], sizes = [2, 192], strides = [1, 1]} : vector<16x192xf32> to vector<2x192xf32>
    %9 = vector.extract_strided_slice %6 {offsets = [4, 0], sizes = [2, 192], strides = [1, 1]} : vector<16x192xf32> to vector<2x192xf32>
    %10 = vector.extract_strided_slice %6 {offsets = [6, 0], sizes = [2, 192], strides = [1, 1]} : vector<16x192xf32> to vector<2x192xf32>
    %11 = vector.extract_strided_slice %6 {offsets = [8, 0], sizes = [2, 192], strides = [1, 1]} : vector<16x192xf32> to vector<2x192xf32>
    %12 = vector.extract_strided_slice %6 {offsets = [10, 0], sizes = [2, 192], strides = [1, 1]} : vector<16x192xf32> to vector<2x192xf32>
    %13 = vector.extract_strided_slice %6 {offsets = [12, 0], sizes = [2, 192], strides = [1, 1]} : vector<16x192xf32> to vector<2x192xf32>
    %14 = vector.extract_strided_slice %6 {offsets = [14, 0], sizes = [2, 192], strides = [1, 1]} : vector<16x192xf32> to vector<2x192xf32>
    %15 = tpu.iota {dimensions = array<i32: 1>} : vector<2x192xi32>
    %c64_i32 = arith.constant 64 : i32
    %c0_i32 = arith.constant 0 : i32
    %16 = arith.cmpi eq, %c64_i32, %c0_i32 : i32
    %c1_i32 = arith.constant 1 : i32
    %17 = arith.select %16, %c1_i32, %c64_i32 : i32
    %18 = vector.broadcast %17 : i32 to vector<2x192xi32>
    %19 = arith.remsi %15, %18 : vector<2x192xi32>
    %c0_i32_6 = arith.constant 0 : i32
    %20 = vector.broadcast %c0_i32_6 : i32 to vector<2x192xi32>
    %21 = arith.cmpi ne, %19, %20 : vector<2x192xi32>
    %c0_i32_7 = arith.constant 0 : i32
    %22 = vector.broadcast %c0_i32_7 : i32 to vector<2x192xi32>
    %23 = arith.cmpi slt, %19, %22 : vector<2x192xi32>
    %c0_i32_8 = arith.constant 0 : i32
    %24 = arith.cmpi slt, %17, %c0_i32_8 : i32
    %25 = vector.broadcast %24 : i1 to vector<2x192xi1>
    %26 = vector.broadcast %25 : vector<2x192xi1> to vector<2x192xi1>
    %27 = arith.xori %23, %26 : vector<2x192xi1>
    %28 = arith.andi %27, %21 : vector<2x192xi1>
    %29 = vector.broadcast %17 : i32 to vector<2x192xi32>
    %30 = arith.addi %19, %29 : vector<2x192xi32>
    %31 = arith.select %28, %30, %19 : vector<2x192xi1>, vector<2x192xi32>
    %c32_i32 = arith.constant 32 : i32
    %32 = vector.broadcast %c32_i32 : i32 to vector<2x192xi32>
    %33 = arith.cmpi sge, %31, %32 : vector<2x192xi32>
    %34 = arith.select %33, %14, %7 : vector<2x192xi1>, vector<2x192xf32>
    %35 = arith.select %33, %13, %8 : vector<2x192xi1>, vector<2x192xf32>
    %36 = arith.select %33, %12, %9 : vector<2x192xi1>, vector<2x192xf32>
    %37 = arith.select %33, %11, %10 : vector<2x192xi1>, vector<2x192xf32>
    %38 = arith.select %33, %10, %11 : vector<2x192xi1>, vector<2x192xf32>
    %39 = arith.select %33, %9, %12 : vector<2x192xi1>, vector<2x192xf32>
    %40 = arith.select %33, %8, %13 : vector<2x192xi1>, vector<2x192xf32>
    %41 = arith.select %33, %7, %14 : vector<2x192xi1>, vector<2x192xf32>
    %c0_9 = arith.constant 0 : index
    %c0_10 = arith.constant 0 : index
    %42 = vector.load %arg3[%c0_9, %c0_10] : memref<64x192xf32, #tpu.memory_space<vmem>>, vector<64x192xf32>
    %c0_11 = arith.constant 0 : index
    %c0_12 = arith.constant 0 : index
    %43 = vector.load %arg5[%c0_11, %c0_12] : memref<1x64xf32, #tpu.memory_space<vmem>>, vector<1x64xf32>
    %44 = vector.shape_cast %43 : vector<1x64xf32> to vector<1x64xf32>
    %45 = vector.broadcast %44 : vector<1x64xf32> to vector<2x64xf32>
    %cst_13 = arith.constant 0.000000e+00 : f32
    %46 = vector.broadcast %cst_13 : f32 to vector<2x64xf32>
    %cst_14 = arith.constant 0.000000e+00 : f32
    %47 = vector.broadcast %cst_14 : f32 to vector<2x192xf32>
    %48 = vector.extract_strided_slice %34 {offsets = [0, 0], sizes = [2, 128], strides = [1, 1]} : vector<2x192xf32> to vector<2x128xf32>
    %49 = vector.extract_strided_slice %47 {offsets = [0, 0], sizes = [2, 128], strides = [1, 1]} : vector<2x192xf32> to vector<2x128xf32>
    %50 = arith.addf %48, %49 : vector<2x128xf32>
    %51 = arith.negf %50 : vector<2x128xf32>
    %52 = math.exp %51 : vector<2x128xf32>
    %cst_15 = arith.constant 1.000000e+00 : f32
    %53 = vector.broadcast %cst_15 : f32 to vector<2x128xf32>
    %54 = arith.addf %53, %52 : vector<2x128xf32>
    %55 = arith.divf %53, %54 : vector<2x128xf32>
    %56 = vector.extract_strided_slice %55 {offsets = [0, 0], sizes = [2, 64], strides = [1, 1]} : vector<2x128xf32> to vector<2x64xf32>
    %57 = vector.extract_strided_slice %55 {offsets = [0, 64], sizes = [2, 64], strides = [1, 1]} : vector<2x128xf32> to vector<2x64xf32>
    %58 = vector.extract_strided_slice %34 {offsets = [0, 128], sizes = [2, 64], strides = [1, 1]} : vector<2x192xf32> to vector<2x64xf32>
    %59 = vector.extract_strided_slice %47 {offsets = [0, 128], sizes = [2, 64], strides = [1, 1]} : vector<2x192xf32> to vector<2x64xf32>
    %60 = arith.addf %59, %45 : vector<2x64xf32>
    %61 = arith.mulf %56, %60 : vector<2x64xf32>
    %62 = arith.addf %58, %61 : vector<2x64xf32>
    %63 = math.tanh %62 : vector<2x64xf32>
    %cst_16 = arith.constant 1.000000e+00 : f32
    %64 = vector.broadcast %cst_16 : f32 to vector<2x64xf32>
    %65 = arith.subf %64, %57 : vector<2x64xf32>
    %66 = arith.mulf %65, %63 : vector<2x64xf32>
    %67 = arith.mulf %57, %46 : vector<2x64xf32>
    %68 = arith.addf %66, %67 : vector<2x64xf32>
    %c0_17 = arith.constant 0 : index
    %c0_18 = arith.constant 0 : index
    %c0_19 = arith.constant 0 : index
    %69 = vector.load %arg6[%c0_17, %c0_18, %c0_19] : memref<8x2x64xf32, #tpu.memory_space<vmem>>, vector<1x2x64xf32>
    %70 = vector.shape_cast %69 : vector<1x2x64xf32> to vector<2x64xf32>
    %71 = vector.shape_cast %68 : vector<2x64xf32> to vector<1x2x64xf32>
    tpu.vector_store %arg6[%c0_17, %c0_18, %c0_19], %71 {strides = array<i32>} : memref<8x2x64xf32, #tpu.memory_space<vmem>>, vector<1x2x64xf32>,
    %cst_20 = arith.constant dense<0.000000e+00> : vector<2x192xf32>
    %72 = tpu.matmul %68, %42, %cst_20 {dimension_numbers = #tpu.dot_dimension_numbers<[1], [0], [0], [1], [0, 0, 1, 1], [], []>} : vector<2x64xf32>, vector<64x192xf32>, vector<2x192xf32> -> vector<2x192xf32>
    %73 = vector.extract_strided_slice %35 {offsets = [0, 0], sizes = [2, 128], strides = [1, 1]} : vector<2x192xf32> to vector<2x128xf32>
    %74 = vector.extract_strided_slice %72 {offsets = [0, 0], sizes = [2, 128], strides = [1, 1]} : vector<2x192xf32> to vector<2x128xf32>
    %75 = arith.addf %73, %74 : vector<2x128xf32>
    %76 = arith.negf %75 : vector<2x128xf32>
    %77 = math.exp %76 : vector<2x128xf32>
    %cst_21 = arith.constant 1.000000e+00 : f32
    %78 = vector.broadcast %cst_21 : f32 to vector<2x128xf32>
    %79 = arith.addf %78, %77 : vector<2x128xf32>
    %80 = arith.divf %78, %79 : vector<2x128xf32>
    %81 = vector.extract_strided_slice %80 {offsets = [0, 0], sizes = [2, 64], strides = [1, 1]} : vector<2x128xf32> to vector<2x64xf32>
    %82 = vector.extract_strided_slice %80 {offsets = [0, 64], sizes = [2, 64], strides = [1, 1]} : vector<2x128xf32> to vector<2x64xf32>
    %83 = vector.extract_strided_slice %35 {offsets = [0, 128], sizes = [2, 64], strides = [1, 1]} : vector<2x192xf32> to vector<2x64xf32>
    %84 = vector.extract_strided_slice %72 {offsets = [0, 128], sizes = [2, 64], strides = [1, 1]} : vector<2x192xf32> to vector<2x64xf32>
    %85 = arith.addf %84, %45 : vector<2x64xf32>
    %86 = arith.mulf %81, %85 : vector<2x64xf32>
    %87 = arith.addf %83, %86 : vector<2x64xf32>
    %88 = math.tanh %87 : vector<2x64xf32>
    %cst_22 = arith.constant 1.000000e+00 : f32
    %89 = vector.broadcast %cst_22 : f32 to vector<2x64xf32>
    %90 = arith.subf %89, %82 : vector<2x64xf32>
    %91 = arith.mulf %90, %88 : vector<2x64xf32>
    %92 = arith.mulf %82, %68 : vector<2x64xf32>
    %93 = arith.addf %91, %92 : vector<2x64xf32>
    %c1 = arith.constant 1 : index
    %c0_23 = arith.constant 0 : index
    %c0_24 = arith.constant 0 : index
    %94 = vector.load %arg6[%c1, %c0_23, %c0_24] : memref<8x2x64xf32, #tpu.memory_space<vmem>>, vector<1x2x64xf32>
    %95 = vector.shape_cast %94 : vector<1x2x64xf32> to vector<2x64xf32>
    %96 = vector.shape_cast %93 : vector<2x64xf32> to vector<1x2x64xf32>
    tpu.vector_store %arg6[%c1, %c0_23, %c0_24], %96 {strides = array<i32>} : memref<8x2x64xf32, #tpu.memory_space<vmem>>, vector<1x2x64xf32>,
    %cst_25 = arith.constant dense<0.000000e+00> : vector<2x192xf32>
    %97 = tpu.matmul %93, %42, %cst_25 {dimension_numbers = #tpu.dot_dimension_numbers<[1], [0], [0], [1], [0, 0, 1, 1], [], []>} : vector<2x64xf32>, vector<64x192xf32>, vector<2x192xf32> -> vector<2x192xf32>
    %98 = vector.extract_strided_slice %36 {offsets = [0, 0], sizes = [2, 128], strides = [1, 1]} : vector<2x192xf32> to vector<2x128xf32>
    %99 = vector.extract_strided_slice %97 {offsets = [0, 0], sizes = [2, 128], strides = [1, 1]} : vector<2x192xf32> to vector<2x128xf32>
    %100 = arith.addf %98, %99 : vector<2x128xf32>
    %101 = arith.negf %100 : vector<2x128xf32>
    %102 = math.exp %101 : vector<2x128xf32>
    %cst_26 = arith.constant 1.000000e+00 : f32
    %103 = vector.broadcast %cst_26 : f32 to vector<2x128xf32>
    %104 = arith.addf %103, %102 : vector<2x128xf32>
    %105 = arith.divf %103, %104 : vector<2x128xf32>
    %106 = vector.extract_strided_slice %105 {offsets = [0, 0], sizes = [2, 64], strides = [1, 1]} : vector<2x128xf32> to vector<2x64xf32>
    %107 = vector.extract_strided_slice %105 {offsets = [0, 64], sizes = [2, 64], strides = [1, 1]} : vector<2x128xf32> to vector<2x64xf32>
    %108 = vector.extract_strided_slice %36 {offsets = [0, 128], sizes = [2, 64], strides = [1, 1]} : vector<2x192xf32> to vector<2x64xf32>
    %109 = vector.extract_strided_slice %97 {offsets = [0, 128], sizes = [2, 64], strides = [1, 1]} : vector<2x192xf32> to vector<2x64xf32>
    %110 = arith.addf %109, %45 : vector<2x64xf32>
    %111 = arith.mulf %106, %110 : vector<2x64xf32>
    %112 = arith.addf %108, %111 : vector<2x64xf32>
    %113 = math.tanh %112 : vector<2x64xf32>
    %cst_27 = arith.constant 1.000000e+00 : f32
    %114 = vector.broadcast %cst_27 : f32 to vector<2x64xf32>
    %115 = arith.subf %114, %107 : vector<2x64xf32>
    %116 = arith.mulf %115, %113 : vector<2x64xf32>
    %117 = arith.mulf %107, %93 : vector<2x64xf32>
    %118 = arith.addf %116, %117 : vector<2x64xf32>
    %c2 = arith.constant 2 : index
    %c0_28 = arith.constant 0 : index
    %c0_29 = arith.constant 0 : index
    %119 = vector.load %arg6[%c2, %c0_28, %c0_29] : memref<8x2x64xf32, #tpu.memory_space<vmem>>, vector<1x2x64xf32>
    %120 = vector.shape_cast %119 : vector<1x2x64xf32> to vector<2x64xf32>
    %121 = vector.shape_cast %118 : vector<2x64xf32> to vector<1x2x64xf32>
    tpu.vector_store %arg6[%c2, %c0_28, %c0_29], %121 {strides = array<i32>} : memref<8x2x64xf32, #tpu.memory_space<vmem>>, vector<1x2x64xf32>,
    %cst_30 = arith.constant dense<0.000000e+00> : vector<2x192xf32>
    %122 = tpu.matmul %118, %42, %cst_30 {dimension_numbers = #tpu.dot_dimension_numbers<[1], [0], [0], [1], [0, 0, 1, 1], [], []>} : vector<2x64xf32>, vector<64x192xf32>, vector<2x192xf32> -> vector<2x192xf32>
    %123 = vector.extract_strided_slice %37 {offsets = [0, 0], sizes = [2, 128], strides = [1, 1]} : vector<2x192xf32> to vector<2x128xf32>
    %124 = vector.extract_strided_slice %122 {offsets = [0, 0], sizes = [2, 128], strides = [1, 1]} : vector<2x192xf32> to vector<2x128xf32>
    %125 = arith.addf %123, %124 : vector<2x128xf32>
    %126 = arith.negf %125 : vector<2x128xf32>
    %127 = math.exp %126 : vector<2x128xf32>
    %cst_31 = arith.constant 1.000000e+00 : f32
    %128 = vector.broadcast %cst_31 : f32 to vector<2x128xf32>
    %129 = arith.addf %128, %127 : vector<2x128xf32>
    %130 = arith.divf %128, %129 : vector<2x128xf32>
    %131 = vector.extract_strided_slice %130 {offsets = [0, 0], sizes = [2, 64], strides = [1, 1]} : vector<2x128xf32> to vector<2x64xf32>
    %132 = vector.extract_strided_slice %130 {offsets = [0, 64], sizes = [2, 64], strides = [1, 1]} : vector<2x128xf32> to vector<2x64xf32>
    %133 = vector.extract_strided_slice %37 {offsets = [0, 128], sizes = [2, 64], strides = [1, 1]} : vector<2x192xf32> to vector<2x64xf32>
    %134 = vector.extract_strided_slice %122 {offsets = [0, 128], sizes = [2, 64], strides = [1, 1]} : vector<2x192xf32> to vector<2x64xf32>
    %135 = arith.addf %134, %45 : vector<2x64xf32>
    %136 = arith.mulf %131, %135 : vector<2x64xf32>
    %137 = arith.addf %133, %136 : vector<2x64xf32>
    %138 = math.tanh %137 : vector<2x64xf32>
    %cst_32 = arith.constant 1.000000e+00 : f32
    %139 = vector.broadcast %cst_32 : f32 to vector<2x64xf32>
    %140 = arith.subf %139, %132 : vector<2x64xf32>
    %141 = arith.mulf %140, %138 : vector<2x64xf32>
    %142 = arith.mulf %132, %118 : vector<2x64xf32>
    %143 = arith.addf %141, %142 : vector<2x64xf32>
    %c3 = arith.constant 3 : index
    %c0_33 = arith.constant 0 : index
    %c0_34 = arith.constant 0 : index
    %144 = vector.load %arg6[%c3, %c0_33, %c0_34] : memref<8x2x64xf32, #tpu.memory_space<vmem>>, vector<1x2x64xf32>
    %145 = vector.shape_cast %144 : vector<1x2x64xf32> to vector<2x64xf32>
    %146 = vector.shape_cast %143 : vector<2x64xf32> to vector<1x2x64xf32>
    tpu.vector_store %arg6[%c3, %c0_33, %c0_34], %146 {strides = array<i32>} : memref<8x2x64xf32, #tpu.memory_space<vmem>>, vector<1x2x64xf32>,
    %cst_35 = arith.constant dense<0.000000e+00> : vector<2x192xf32>
    %147 = tpu.matmul %143, %42, %cst_35 {dimension_numbers = #tpu.dot_dimension_numbers<[1], [0], [0], [1], [0, 0, 1, 1], [], []>} : vector<2x64xf32>, vector<64x192xf32>, vector<2x192xf32> -> vector<2x192xf32>
    %148 = vector.extract_strided_slice %38 {offsets = [0, 0], sizes = [2, 128], strides = [1, 1]} : vector<2x192xf32> to vector<2x128xf32>
    %149 = vector.extract_strided_slice %147 {offsets = [0, 0], sizes = [2, 128], strides = [1, 1]} : vector<2x192xf32> to vector<2x128xf32>
    %150 = arith.addf %148, %149 : vector<2x128xf32>
    %151 = arith.negf %150 : vector<2x128xf32>
    %152 = math.exp %151 : vector<2x128xf32>
    %cst_36 = arith.constant 1.000000e+00 : f32
    %153 = vector.broadcast %cst_36 : f32 to vector<2x128xf32>
    %154 = arith.addf %153, %152 : vector<2x128xf32>
    %155 = arith.divf %153, %154 : vector<2x128xf32>
    %156 = vector.extract_strided_slice %155 {offsets = [0, 0], sizes = [2, 64], strides = [1, 1]} : vector<2x128xf32> to vector<2x64xf32>
    %157 = vector.extract_strided_slice %155 {offsets = [0, 64], sizes = [2, 64], strides = [1, 1]} : vector<2x128xf32> to vector<2x64xf32>
    %158 = vector.extract_strided_slice %38 {offsets = [0, 128], sizes = [2, 64], strides = [1, 1]} : vector<2x192xf32> to vector<2x64xf32>
    %159 = vector.extract_strided_slice %147 {offsets = [0, 128], sizes = [2, 64], strides = [1, 1]} : vector<2x192xf32> to vector<2x64xf32>
    %160 = arith.addf %159, %45 : vector<2x64xf32>
    %161 = arith.mulf %156, %160 : vector<2x64xf32>
    %162 = arith.addf %158, %161 : vector<2x64xf32>
    %163 = math.tanh %162 : vector<2x64xf32>
    %cst_37 = arith.constant 1.000000e+00 : f32
    %164 = vector.broadcast %cst_37 : f32 to vector<2x64xf32>
    %165 = arith.subf %164, %157 : vector<2x64xf32>
    %166 = arith.mulf %165, %163 : vector<2x64xf32>
    %167 = arith.mulf %157, %143 : vector<2x64xf32>
    %168 = arith.addf %166, %167 : vector<2x64xf32>
    %c4 = arith.constant 4 : index
    %c0_38 = arith.constant 0 : index
    %c0_39 = arith.constant 0 : index
    %169 = vector.load %arg6[%c4, %c0_38, %c0_39] : memref<8x2x64xf32, #tpu.memory_space<vmem>>, vector<1x2x64xf32>
    %170 = vector.shape_cast %169 : vector<1x2x64xf32> to vector<2x64xf32>
    %171 = vector.shape_cast %168 : vector<2x64xf32> to vector<1x2x64xf32>
    tpu.vector_store %arg6[%c4, %c0_38, %c0_39], %171 {strides = array<i32>} : memref<8x2x64xf32, #tpu.memory_space<vmem>>, vector<1x2x64xf32>,
    %cst_40 = arith.constant dense<0.000000e+00> : vector<2x192xf32>
    %172 = tpu.matmul %168, %42, %cst_40 {dimension_numbers = #tpu.dot_dimension_numbers<[1], [0], [0], [1], [0, 0, 1, 1], [], []>} : vector<2x64xf32>, vector<64x192xf32>, vector<2x192xf32> -> vector<2x192xf32>
    %173 = vector.extract_strided_slice %39 {offsets = [0, 0], sizes = [2, 128], strides = [1, 1]} : vector<2x192xf32> to vector<2x128xf32>
    %174 = vector.extract_strided_slice %172 {offsets = [0, 0], sizes = [2, 128], strides = [1, 1]} : vector<2x192xf32> to vector<2x128xf32>
    %175 = arith.addf %173, %174 : vector<2x128xf32>
    %176 = arith.negf %175 : vector<2x128xf32>
    %177 = math.exp %176 : vector<2x128xf32>
    %cst_41 = arith.constant 1.000000e+00 : f32
    %178 = vector.broadcast %cst_41 : f32 to vector<2x128xf32>
    %179 = arith.addf %178, %177 : vector<2x128xf32>
    %180 = arith.divf %178, %179 : vector<2x128xf32>
    %181 = vector.extract_strided_slice %180 {offsets = [0, 0], sizes = [2, 64], strides = [1, 1]} : vector<2x128xf32> to vector<2x64xf32>
    %182 = vector.extract_strided_slice %180 {offsets = [0, 64], sizes = [2, 64], strides = [1, 1]} : vector<2x128xf32> to vector<2x64xf32>
    %183 = vector.extract_strided_slice %39 {offsets = [0, 128], sizes = [2, 64], strides = [1, 1]} : vector<2x192xf32> to vector<2x64xf32>
    %184 = vector.extract_strided_slice %172 {offsets = [0, 128], sizes = [2, 64], strides = [1, 1]} : vector<2x192xf32> to vector<2x64xf32>
    %185 = arith.addf %184, %45 : vector<2x64xf32>
    %186 = arith.mulf %181, %185 : vector<2x64xf32>
    %187 = arith.addf %183, %186 : vector<2x64xf32>
    %188 = math.tanh %187 : vector<2x64xf32>
    %cst_42 = arith.constant 1.000000e+00 : f32
    %189 = vector.broadcast %cst_42 : f32 to vector<2x64xf32>
    %190 = arith.subf %189, %182 : vector<2x64xf32>
    %191 = arith.mulf %190, %188 : vector<2x64xf32>
    %192 = arith.mulf %182, %168 : vector<2x64xf32>
    %193 = arith.addf %191, %192 : vector<2x64xf32>
    %c5 = arith.constant 5 : index
    %c0_43 = arith.constant 0 : index
    %c0_44 = arith.constant 0 : index
    %194 = vector.load %arg6[%c5, %c0_43, %c0_44] : memref<8x2x64xf32, #tpu.memory_space<vmem>>, vector<1x2x64xf32>
    %195 = vector.shape_cast %194 : vector<1x2x64xf32> to vector<2x64xf32>
    %196 = vector.shape_cast %193 : vector<2x64xf32> to vector<1x2x64xf32>
    tpu.vector_store %arg6[%c5, %c0_43, %c0_44], %196 {strides = array<i32>} : memref<8x2x64xf32, #tpu.memory_space<vmem>>, vector<1x2x64xf32>,
    %cst_45 = arith.constant dense<0.000000e+00> : vector<2x192xf32>
    %197 = tpu.matmul %193, %42, %cst_45 {dimension_numbers = #tpu.dot_dimension_numbers<[1], [0], [0], [1], [0, 0, 1, 1], [], []>} : vector<2x64xf32>, vector<64x192xf32>, vector<2x192xf32> -> vector<2x192xf32>
    %198 = vector.extract_strided_slice %40 {offsets = [0, 0], sizes = [2, 128], strides = [1, 1]} : vector<2x192xf32> to vector<2x128xf32>
    %199 = vector.extract_strided_slice %197 {offsets = [0, 0], sizes = [2, 128], strides = [1, 1]} : vector<2x192xf32> to vector<2x128xf32>
    %200 = arith.addf %198, %199 : vector<2x128xf32>
    %201 = arith.negf %200 : vector<2x128xf32>
    %202 = math.exp %201 : vector<2x128xf32>
    %cst_46 = arith.constant 1.000000e+00 : f32
    %203 = vector.broadcast %cst_46 : f32 to vector<2x128xf32>
    %204 = arith.addf %203, %202 : vector<2x128xf32>
    %205 = arith.divf %203, %204 : vector<2x128xf32>
    %206 = vector.extract_strided_slice %205 {offsets = [0, 0], sizes = [2, 64], strides = [1, 1]} : vector<2x128xf32> to vector<2x64xf32>
    %207 = vector.extract_strided_slice %205 {offsets = [0, 64], sizes = [2, 64], strides = [1, 1]} : vector<2x128xf32> to vector<2x64xf32>
    %208 = vector.extract_strided_slice %40 {offsets = [0, 128], sizes = [2, 64], strides = [1, 1]} : vector<2x192xf32> to vector<2x64xf32>
    %209 = vector.extract_strided_slice %197 {offsets = [0, 128], sizes = [2, 64], strides = [1, 1]} : vector<2x192xf32> to vector<2x64xf32>
    %210 = arith.addf %209, %45 : vector<2x64xf32>
    %211 = arith.mulf %206, %210 : vector<2x64xf32>
    %212 = arith.addf %208, %211 : vector<2x64xf32>
    %213 = math.tanh %212 : vector<2x64xf32>
    %cst_47 = arith.constant 1.000000e+00 : f32
    %214 = vector.broadcast %cst_47 : f32 to vector<2x64xf32>
    %215 = arith.subf %214, %207 : vector<2x64xf32>
    %216 = arith.mulf %215, %213 : vector<2x64xf32>
    %217 = arith.mulf %207, %193 : vector<2x64xf32>
    %218 = arith.addf %216, %217 : vector<2x64xf32>
    %c6 = arith.constant 6 : index
    %c0_48 = arith.constant 0 : index
    %c0_49 = arith.constant 0 : index
    %219 = vector.load %arg6[%c6, %c0_48, %c0_49] : memref<8x2x64xf32, #tpu.memory_space<vmem>>, vector<1x2x64xf32>
    %220 = vector.shape_cast %219 : vector<1x2x64xf32> to vector<2x64xf32>
    %221 = vector.shape_cast %218 : vector<2x64xf32> to vector<1x2x64xf32>
    tpu.vector_store %arg6[%c6, %c0_48, %c0_49], %221 {strides = array<i32>} : memref<8x2x64xf32, #tpu.memory_space<vmem>>, vector<1x2x64xf32>,
    %cst_50 = arith.constant dense<0.000000e+00> : vector<2x192xf32>
    %222 = tpu.matmul %218, %42, %cst_50 {dimension_numbers = #tpu.dot_dimension_numbers<[1], [0], [0], [1], [0, 0, 1, 1], [], []>} : vector<2x64xf32>, vector<64x192xf32>, vector<2x192xf32> -> vector<2x192xf32>
    %223 = vector.extract_strided_slice %41 {offsets = [0, 0], sizes = [2, 128], strides = [1, 1]} : vector<2x192xf32> to vector<2x128xf32>
    %224 = vector.extract_strided_slice %222 {offsets = [0, 0], sizes = [2, 128], strides = [1, 1]} : vector<2x192xf32> to vector<2x128xf32>
    %225 = arith.addf %223, %224 : vector<2x128xf32>
    %226 = arith.negf %225 : vector<2x128xf32>
    %227 = math.exp %226 : vector<2x128xf32>
    %cst_51 = arith.constant 1.000000e+00 : f32
    %228 = vector.broadcast %cst_51 : f32 to vector<2x128xf32>
    %229 = arith.addf %228, %227 : vector<2x128xf32>
    %230 = arith.divf %228, %229 : vector<2x128xf32>
    %231 = vector.extract_strided_slice %230 {offsets = [0, 0], sizes = [2, 64], strides = [1, 1]} : vector<2x128xf32> to vector<2x64xf32>
    %232 = vector.extract_strided_slice %230 {offsets = [0, 64], sizes = [2, 64], strides = [1, 1]} : vector<2x128xf32> to vector<2x64xf32>
    %233 = vector.extract_strided_slice %41 {offsets = [0, 128], sizes = [2, 64], strides = [1, 1]} : vector<2x192xf32> to vector<2x64xf32>
    %234 = vector.extract_strided_slice %222 {offsets = [0, 128], sizes = [2, 64], strides = [1, 1]} : vector<2x192xf32> to vector<2x64xf32>
    %235 = arith.addf %234, %45 : vector<2x64xf32>
    %236 = arith.mulf %231, %235 : vector<2x64xf32>
    %237 = arith.addf %233, %236 : vector<2x64xf32>
    %238 = math.tanh %237 : vector<2x64xf32>
    %cst_52 = arith.constant 1.000000e+00 : f32
    %239 = vector.broadcast %cst_52 : f32 to vector<2x64xf32>
    %240 = arith.subf %239, %232 : vector<2x64xf32>
    %241 = arith.mulf %240, %238 : vector<2x64xf32>
    %242 = arith.mulf %232, %218 : vector<2x64xf32>
    %243 = arith.addf %241, %242 : vector<2x64xf32>
    %c7 = arith.constant 7 : index
    %c0_53 = arith.constant 0 : index
    %c0_54 = arith.constant 0 : index
    %244 = vector.load %arg6[%c7, %c0_53, %c0_54] : memref<8x2x64xf32, #tpu.memory_space<vmem>>, vector<1x2x64xf32>
    %245 = vector.shape_cast %244 : vector<1x2x64xf32> to vector<2x64xf32>
    %246 = vector.shape_cast %243 : vector<2x64xf32> to vector<1x2x64xf32>
    tpu.vector_store %arg6[%c7, %c0_53, %c0_54], %246 {strides = array<i32>} : memref<8x2x64xf32, #tpu.memory_space<vmem>>, vector<1x2x64xf32>,
    %c0_55 = arith.constant 0 : index
    %c0_56 = arith.constant 0 : index
    %247 = vector.load %arg7[%c0_55, %c0_56] : memref<2x64xf32, #tpu.memory_space<vmem>>, vector<2x64xf32>
    tpu.vector_store %arg7[%c0_55, %c0_56], %243 {strides = array<i32>} : memref<2x64xf32, #tpu.memory_space<vmem>>, vector<2x64xf32>,
    return
  }
  func.func @transform_0(%arg0: i32) -> (i32, i32, i32) {
    %c0_i32 = arith.constant 0 : i32
    %c0_i32_0 = arith.constant 0 : i32
    %c0_i32_1 = arith.constant 0 : i32
    return %arg0, %c0_i32, %c0_i32_0 : i32, i32, i32
  }
  func.func @transform_1(%arg0: i32) -> (i32, i32) {
    %c0_i32 = arith.constant 0 : i32
    %c0_i32_0 = arith.constant 0 : i32
    %c0_i32_1 = arith.constant 0 : i32
    return %c0_i32, %c0_i32_0 : i32, i32
  }
  func.func @transform_2(%arg0: i32) -> (i32, i32) {
    %c0_i32 = arith.constant 0 : i32
    %c0_i32_0 = arith.constant 0 : i32
    %c0_i32_1 = arith.constant 0 : i32
    return %c0_i32, %c0_i32_0 : i32, i32
  }
  func.func @transform_3(%arg0: i32) -> (i32, i32) {
    %c0_i32 = arith.constant 0 : i32
    %c0_i32_0 = arith.constant 0 : i32
    %c0_i32_1 = arith.constant 0 : i32
    return %c0_i32, %c0_i32_0 : i32, i32
  }
  func.func @transform_4(%arg0: i32) -> (i32, i32) {
    %c0_i32 = arith.constant 0 : i32
    %c0_i32_0 = arith.constant 0 : i32
    %c0_i32_1 = arith.constant 0 : i32
    return %c0_i32, %c0_i32_0 : i32, i32
  }
  func.func @transform_5(%arg0: i32) -> (i32, i32, i32) {
    %c0_i32 = arith.constant 0 : i32
    %c0_i32_0 = arith.constant 0 : i32
    %c0_i32_1 = arith.constant 0 : i32
    return %c0_i32, %arg0, %c0_i32_0 : i32, i32, i32
  }
  func.func @transform_6(%arg0: i32) -> (i32, i32) {
    %c0_i32 = arith.constant 0 : i32
    %c0_i32_0 = arith.constant 0 : i32
    return %arg0, %c0_i32 : i32, i32
  }
}

</mosaic_0001>

<llo_original>
// kernel: encode_birnn_forward.1
$region0: #{encode_birnn_forward.1}
  #allocation0 [shape = 'u32[]', space=smem, size = 0x4, offset = 0x4, fixed_abs, tag = 'smem constant byte address 0x4 - core index']
  #allocation1 [shape = 'u32[144,128]{1,0:T(1,128)}', space=vmem, size = 0x12000, scoped, tag = 'internal scratch']
  %s0 = inlined_call_operand.vmem [shape: f32[1,16,16], index: 0, kind: input, shape index: {}]
  %s1 = inlined_call_operand.vmem [shape: f32[16,192], index: 1, kind: input, shape index: {}]
  %s2 = inlined_call_operand.hbm [shape: f32[64,192], index: 2, kind: input, shape index: {}]
  %s3 = inlined_call_operand.vmem [shape: f32[1,192], index: 3, kind: input, shape index: {}]
  %s4 = inlined_call_operand.vmem [shape: f32[1,64], index: 4, kind: input, shape index: {}]
  %s5 = inlined_call_operand.vmem [shape: f32[8,2,64], index: 5, kind: output, shape index: {0}]
  %s6 = inlined_call_operand.vmem [shape: f32[2,64], index: 6, kind: output, shape index: {1}]
  %7 = xla_tuple %s5, %s6
  %s8 = sld [smem:[#allocation0]]
  $region42: #{encode_birnn_forward.1} parent=0
    _
  %s10 = ssub.s32 1, %s8
  %s11 = scalar_select 0, %s10, %s8
  $region1: #{encode_birnn_forward.1} parent=0
    #allocation2 [shape = 'u8[65536]{0}', space=vmem, size = 0x10000, scoped, tag = 'input window, operand 2, single buffered']
    #allocation3 [shape = 's32[1]{0}', space=sflag, size = 0x4, scoped, tag = 'scoped memory for encode_birnn_forward.1']
    %12 = vsyncpa [#allocation3], 0
    // Predicated region
    $region2: #{encode_birnn_forward.1} parent=1 // pred_check
      _
    $region3: #{encode_birnn_forward.1} parent=1 // pred_check_branch
      %14 = sbr.rel (0) target = $region5
    $region4: #{encode_birnn_forward.1} parent=1 // pred_region
      _
    $region5: #{encode_birnn_forward.1} parent=1 // pred_fallthru
      _
    // Predicated region
    $region6: #{encode_birnn_forward.1} parent=1 // pred_check
      _
    $region7: #{encode_birnn_forward.1} parent=1 // pred_check_branch
      %16 = sbr.rel (0) target = $region9
    $region8: #{encode_birnn_forward.1} parent=1 // pred_region
      _
    $region9: #{encode_birnn_forward.1} parent=1 // pred_fallthru
      _
    // Predicated region
    $region10: #{encode_birnn_forward.1} parent=1 // pred_check
      _
    $region11: #{encode_birnn_forward.1} parent=1 // pred_check_branch
      %18 = sbr.rel (0) target = $region13
    $region12: #{encode_birnn_forward.1} parent=1 // pred_region
      %s20 = ssub.s32 2048, 2048
      %21 = vsyncadd [#allocation3], %s20
      %s22 = sshll.u32 [#allocation2], 4
      %s23 = int_to_ptr.vmem [resolvable:$true] %s22
      %28 = dma.hbm_to_vmem [thread:$0]  %s2, 2048, %s23, [#allocation3], 256, 256, 16
    $region13: #{encode_birnn_forward.1} parent=1 // pred_fallthru
      _
    // Predicated region
    $region14: #{encode_birnn_forward.1} parent=1 // pred_check
      _
    $region15: #{encode_birnn_forward.1} parent=1 // pred_check_branch
      %30 = sbr.rel (0) target = $region17
    $region16: #{encode_birnn_forward.1} parent=1 // pred_region
      _
    $region17: #{encode_birnn_forward.1} parent=1 // pred_fallthru
      _
    // Predicated region
    $region18: #{encode_birnn_forward.1} parent=1 // pred_check
      _
    $region19: #{encode_birnn_forward.1} parent=1 // pred_check_branch
      %32 = sbr.rel (0) target = $region21
    $region20: #{encode_birnn_forward.1} parent=1 // pred_region
      _
    $region21: #{encode_birnn_forward.1} parent=1 // pred_fallthru
      _
    // Predicated region
    $region22: #{encode_birnn_forward.1} parent=1 // pred_check
      _
    $region23: #{encode_birnn_forward.1} parent=1 // pred_check_branch
      %34 = sbr.rel (0) target = $region25
    $region24: #{encode_birnn_forward.1} parent=1 // pred_region
      %35 = dma.done [#allocation3], 2048
    $region25: #{encode_birnn_forward.1} parent=1 // pred_fallthru
      _
    %v36 = vld [vmem:[%s0] sm:$0xff]
    %v37 = vld [vmem:[%s0 + $0x8] sm:$0xff]
    %v38 = vld [vmem:[%s1] sm:$0xff]
    %v39 = vld [vmem:[%s1 + $0x8] sm:$0xff]
    %v40 = vld [vmem:[%s1 + $0x10] sm:$0xff]
    %v41 = vld [vmem:[%s1 + $0x18] sm:$0xff]
    %v42 = vld [vmem:[%s3] sm:$0x3]
    %v44 = vlaneseq
    %v45 = vshrl.u32 %v44, 7
    %v46 = vsub.s32 0, %v45
    %v47 = vrot.slane %v42, %v46
    %v48 = vlaneseq
    %v49 = vshrl.u32 %v48, 7
    %v50 = vsub.s32 1, %v49
    %v51 = vrot.slane %v42, %v50
    %vm54 = vcmask 130048
    %v56 = vsel %vm54, %v36, 0
    %v59 = vsel %vm54, %v37, 0
    %61 = vmatprep.subr.mxu0 0.0
    %62 = vmatpush1.msra.mxu0 0.0
    %63 = vmatprep.subr.mxu0 0.0
    %64 = vmatpush1.msra.mxu0 0.0
    %65 = vmatprep.subr.mxu0 0.0
    %66 = vmatpush1.msra.mxu0 0.0
    %67 = vmatprep.subr.mxu0 0.0
    %68 = vmatpush1.msra.mxu0 0.0
    %69 = vmatprep.subr.mxu0 0.0
    %70 = vmatpush1.msra.mxu0 0.0
    %71 = vmatprep.subr.mxu0 0.0
    %72 = vmatpush1.msra.mxu0 0.0
    %73 = vmatprep.subr.mxu0 0.0
    %74 = vmatpush1.msra.mxu0 0.0
    %75 = vmatprep.subr.mxu0 0.0
    %76 = vmatpush1.msra.mxu0 0.0
    %77 = vmatprep.subr.mxu0 0.0
    %78 = vmatpush1.msra.mxu0 0.0
    %79 = vmatprep.subr.mxu0 0.0
    %80 = vmatpush1.msra.mxu0 0.0
    %81 = vmatprep.subr.mxu0 0.0
    %82 = vmatpush1.msra.mxu0 0.0
    %83 = vmatprep.subr.mxu0 0.0
    %84 = vmatpush1.msra.mxu0 0.0
    %85 = vmatprep.subr.mxu0 0.0
    %86 = vmatpush1.msra.mxu0 0.0
    %87 = vmatprep.subr.mxu0 0.0
    %88 = vmatpush1.msra.mxu0 0.0
    %89 = vmatprep.subr.mxu0 %v41
    %90 = vmatpush1.msra.mxu0 %v40
    %91 = vmatprep.subr.mxu0 %v39
    %92 = vmatpush1.msra.mxu0 %v38
    %93 = vmatprep.subr.mxu0 0.0
    %94 = vmatpush2.msra.mxu0 0.0
    %95 = vmatprep.subr.mxu0 0.0
    %96 = vmatpush2.msra.mxu0 0.0
    %97 = vmatprep.subr.mxu0 0.0
    %98 = vmatpush2.msra.mxu0 0.0
    %99 = vmatprep.subr.mxu0 0.0
    %100 = vmatpush2.msra.mxu0 0.0
    %101 = vmatprep.subr.mxu0 0.0
    %102 = vmatpush2.msra.mxu0 0.0
    %103 = vmatprep.subr.mxu0 0.0
    %104 = vmatpush2.msra.mxu0 0.0
    %105 = vmatprep.subr.mxu0 0.0
    %106 = vmatpush2.msra.mxu0 0.0
    %107 = vmatprep.subr.mxu0 0.0
    %108 = vmatpush2.msra.mxu0 0.0
    %109 = vmatprep.subr.mxu0 0.0
    %110 = vmatpush2.msra.mxu0 0.0
    %111 = vmatprep.subr.mxu0 0.0
    %112 = vmatpush2.msra.mxu0 0.0
    %113 = vmatprep.subr.mxu0 0.0
    %114 = vmatpush2.msra.mxu0 0.0
    %115 = vmatprep.subr.mxu0 0.0
    %116 = vmatpush2.msra.mxu0 0.0
    %117 = vmatprep.subr.mxu0 0.0
    %118 = vmatpush2.msra.mxu0 0.0
    %119 = vmatprep.subr.mxu0 0.0
    %120 = vmatpush2.msra.mxu0 0.0
    %121 = vmatprep.subr.mxu0 0.0
    %122 = vmatpush2.msra.mxu0 0.0
    %123 = vmatprep.subr.mxu0 0.0
    %124 = vmatpush2.msra.mxu0 0.0
    %125 = vmatprep.mubr.f32.mxu0 0.0
    %126 = vmatmul.mubr.f32.gmra.mxu0 %v56
    %v127 = vpop.f32.mrf.mxu0
    %v128 = vadd.f32 %v47, %v127
    %v129 = vpop.f32.mrf.mxu0
    %v130 = vadd.f32 %v51, %v129
    %131 = vmatprep.mubr.f32.mxu0 0.0
    %132 = vmatmul.mubr.f32.gmra.mxu0 %v59
    %v133 = vpop.f32.mrf.mxu0
    %v134 = vadd.f32 %v47, %v133
    %v135 = vpop.f32.mrf.mxu0
    %v136 = vadd.f32 %v51, %v135
    %137 = vdwg.mxu0
    %v138 = vlaneseq
    %v139 = vand.u32 %v138, 127
    %v140 = vadd.s32 %v139, 128
    %vm141 = vcmp.lt.s32.totalorder %v139, 0
    %v142 = vsub.s32 0, %v139
    %v143 = vsel %vm141, %v142, %v139
    %v144 = vshrl.u32 %v143, 6
    %v145 = vand.u32 %v143, 63
    %v146 = vsub.s32 0, %v145
    %v147 = vsel %vm141, %v146, %v145
    %vm148 = vcmp.lt.s32.totalorder %v140, 0
    %v149 = vsub.s32 0, %v140
    %v150 = vsel %vm148, %v149, %v140
    %v151 = vshrl.u32 %v150, 6
    %v152 = vand.u32 %v150, 63
    %v153 = vsub.s32 0, %v152
    %v154 = vsel %vm148, %v153, %v152
    %vm155 = vcmp.ne.s32.totalorder %v147, 0
    %vm156 = vcmp.ne.s32.totalorder %v154, 0
    %vm157 = vcmp.lt.s32.totalorder %v147, 0
    %vm158 = vcmp.lt.s32.totalorder %v154, 0
    %vm159 = vmand %vm157, %vm155
    %vm160 = vmand %vm158, %vm156
    %v161 = vadd.s32 %v147, 64
    %v162 = vadd.s32 %v154, 64
    %v163 = vsel %vm159, %v161, %v147
    %v164 = vsel %vm160, %v162, %v154
    %vm165 = vcmp.ge.s32.totalorder %v163, 32
    %vm166 = vcmp.ge.s32.totalorder %v164, 32
    %v169 = vrot.slane %v128, 2
    %v170 = vrot.slane %v130, 2
    %v173 = vsel %vm165, %v134, %v169
    %v174 = vsel %vm166, %v136, %v170
    %v175 = vrot.slane %v128, 6
    %v176 = vrot.slane %v130, 6
    %v179 = vsel %vm165, %v134, %v175
    %v180 = vsel %vm166, %v136, %v176
    %v183 = vrot.slane %v134, 2
    %v184 = vrot.slane %v136, 2
    %v187 = vsel %vm165, %v128, %v183
    %v188 = vsel %vm166, %v130, %v184
    %v189 = vrot.slane %v134, 6
    %v190 = vrot.slane %v136, 6
    %v193 = vsel %vm165, %v128, %v189
    %v194 = vsel %vm166, %v130, %v190
    %v195 = vld [vmem:[#allocation2] sm:$0xff]
    %v196 = vld [vmem:[#allocation2 + $0x8] sm:$0xff]
    %v197 = vld [vmem:[#allocation2 + $0x10] sm:$0xff]
    %v198 = vld [vmem:[#allocation2 + $0x18] sm:$0xff]
    %v199 = vld [vmem:[#allocation2 + $0x20] sm:$0xff]
    %v200 = vld [vmem:[#allocation2 + $0x28] sm:$0xff]
    %v201 = vld [vmem:[#allocation2 + $0x30] sm:$0xff]
    %v202 = vld [vmem:[#allocation2 + $0x38] sm:$0xff]
    %v203 = vld [vmem:[#allocation2 + $0x40] sm:$0xff]
    %v204 = vld [vmem:[#allocation2 + $0x48] sm:$0xff]
    %v205 = vld [vmem:[#allocation2 + $0x50] sm:$0xff]
    %v206 = vld [vmem:[#allocation2 + $0x58] sm:$0xff]
    %v207 = vld [vmem:[#allocation2 + $0x60] sm:$0xff]
    %v208 = vld [vmem:[#allocation2 + $0x68] sm:$0xff]
    %v209 = vld [vmem:[#allocation2 + $0x70] sm:$0xff]
    %v210 = vld [vmem:[#allocation2 + $0x78] sm:$0xff]
    %v211 = vld [vmem:[%s4] sm:$0x1]
    %v213 = vlaneseq
    %v214 = vshrl.u32 %v213, 7
    %v215 = vsub.s32 0, %v214
    %v216 = vrot.slane %v211, %v215
    %v218 = vadd.f32 %v173, 0.0
    %v219 = vxor.u32 %v218, 2147483648
    %v220 = vmul.f32 %v219, 1.442695
    %v221 = vpow.pop %v220
    %v222 = vadd.f32 %v221, 1.0
    %v223 = vrcp.pop %v222
    %v224 = vmul.f32 1.0, %v223
    %v225 = vadd.f32 %v216, 0.0
    %v226 = vmul.f32 %v224, %v225
    %v227 = vadd.f32 %v174, %v226
    %v228 = vtanh.pop %v227
    %v229 = vsub.f32 1.0, %v224
    %231 = vrot.lane.b32.xlu0 %v228, 64
    %v232 = vpop.permute.xlu0 %231
    %v234 = vmul.f32 %v229, %v232
    %v235 = vmul.f32 %v224, 0.0
    %v236 = vadd.f32 %v234, %v235
    %238 = vrot.lane.b32.xlu0 %v236, 64
    %v239 = vpop.permute.xlu0 %238
    %vm241 = vcmask 523270
    %242 = vst.msk [vmem:[%s5 - $0x6] sm:$0xc0] %vm241, %v239
    %v243 = vrot.slane %v236, 6
    %244 = vrot.lane.b32.xlu0 %v243, 64
    %v245 = vpop.permute.xlu0 %244
    %vm246 = vcmask 523264
    %v247 = vsel %vm246, %v245, 0
    %249 = vmatprep.subr.mxu0 0.0
    %250 = vmatpush1.msra.mxu0 0.0
    %251 = vmatprep.subr.mxu0 0.0
    %252 = vmatpush1.msra.mxu0 0.0
    %253 = vmatprep.subr.mxu0 0.0
    %254 = vmatpush1.msra.mxu0 0.0
    %255 = vmatprep.subr.mxu0 0.0
    %256 = vmatpush1.msra.mxu0 0.0
    %257 = vmatprep.subr.mxu0 0.0
    %258 = vmatpush1.msra.mxu0 0.0
    %259 = vmatprep.subr.mxu0 0.0
    %260 = vmatpush1.msra.mxu0 0.0
    %261 = vmatprep.subr.mxu0 0.0
    %262 = vmatpush1.msra.mxu0 0.0
    %263 = vmatprep.subr.mxu0 0.0
    %264 = vmatpush1.msra.mxu0 0.0
    %265 = vmatprep.subr.mxu0 %v210
    %266 = vmatpush1.msra.mxu0 %v209
    %267 = vmatprep.subr.mxu0 %v208
    %268 = vmatpush1.msra.mxu0 %v207
    %269 = vmatprep.subr.mxu0 %v206
    %270 = vmatpush1.msra.mxu0 %v205
    %271 = vmatprep.subr.mxu0 %v204
    %272 = vmatpush1.msra.mxu0 %v203
    %273 = vmatprep.subr.mxu0 %v202
    %274 = vmatpush1.msra.mxu0 %v201
    %275 = vmatprep.subr.mxu0 %v200
    %276 = vmatpush1.msra.mxu0 %v199
    %277 = vmatprep.subr.mxu0 %v198
    %278 = vmatpush1.msra.mxu0 %v197
    %279 = vmatprep.subr.mxu0 %v196
    %280 = vmatpush1.msra.mxu0 %v195
    %281 = vmatprep.subr.mxu0 0.0
    %282 = vmatpush2.msra.mxu0 0.0
    %283 = vmatprep.subr.mxu0 0.0
    %284 = vmatpush2.msra.mxu0 0.0
    %285 = vmatprep.subr.mxu0 0.0
    %286 = vmatpush2.msra.mxu0 0.0
    %287 = vmatprep.subr.mxu0 0.0
    %288 = vmatpush2.msra.mxu0 0.0
    %289 = vmatprep.subr.mxu0 0.0
    %290 = vmatpush2.msra.mxu0 0.0
    %291 = vmatprep.subr.mxu0 0.0
    %292 = vmatpush2.msra.mxu0 0.0
    %293 = vmatprep.subr.mxu0 0.0
    %294 = vmatpush2.msra.mxu0 0.0
    %295 = vmatprep.subr.mxu0 0.0
    %296 = vmatpush2.msra.mxu0 0.0
    %297 = vmatprep.subr.mxu0 0.0
    %298 = vmatpush2.msra.mxu0 0.0
    %299 = vmatprep.subr.mxu0 0.0
    %300 = vmatpush2.msra.mxu0 0.0
    %301 = vmatprep.subr.mxu0 0.0
    %302 = vmatpush2.msra.mxu0 0.0
    %303 = vmatprep.subr.mxu0 0.0
    %304 = vmatpush2.msra.mxu0 0.0
    %305 = vmatprep.subr.mxu0 0.0
    %306 = vmatpush2.msra.mxu0 0.0
    %307 = vmatprep.subr.mxu0 0.0
    %308 = vmatpush2.msra.mxu0 0.0
    %309 = vmatprep.subr.mxu0 0.0
    %310 = vmatpush2.msra.mxu0 0.0
    %311 = vmatprep.subr.mxu0 0.0
    %312 = vmatpush2.msra.mxu0 0.0
    %313 = vmatprep.mubr.f32.mxu0 0.0
    %314 = vmatmul.mubr.f32.gmra.mxu0 %v247
    %v315 = vpop.f32.mrf.mxu0
    %v316 = vadd.f32 0.0, %v315
    %v317 = vpop.f32.mrf.mxu0
    %v318 = vadd.f32 0.0, %v317
    %319 = vdwg.mxu0
    %v321 = vrot.slane %v316, 4
    %v323 = vadd.f32 %v179, %v321
    %v324 = vxor.u32 %v323, 2147483648
    %v325 = vmul.f32 %v324, 1.442695
    %v326 = vpow.pop %v325
    %v327 = vadd.f32 %v326, 1.0
    %v328 = vrcp.pop %v327
    %v329 = vmul.f32 1.0, %v328
    %v330 = vadd.f32 %v318, %v216
    %v332 = vrot.slane %v330, 4
    %v334 = vmul.f32 %v329, %v332
    %v335 = vadd.f32 %v180, %v334
    %v336 = vtanh.pop %v335
    %v337 = vsub.f32 1.0, %v329
    %339 = vrot.lane.b32.xlu0 %v336, 64
    %v340 = vpop.permute.xlu0 %339
    %v342 = vmul.f32 %v337, %v340
    %v343 = vrot.slane %v236, 2
    %v345 = vmul.f32 %v329, %v343
    %v346 = vadd.f32 %v342, %v345
    %348 = vrot.lane.b32.xlu0 %v346, 64
    %v349 = vpop.permute.xlu0 %348
    %s351 = scalar_lea.vmem %s5, 2
    %vm352 = vcmask 521220
    %353 = vst.msk [vmem:[%s351 - $0x4] sm:$0x30] %vm352, %v349
    %v354 = vrot.slane %v346, 4
    %355 = vrot.lane.b32.xlu0 %v354, 64
    %v356 = vpop.permute.xlu0 %355
    %v357 = vsel %vm246, %v356, 0
    %359 = vmatprep.subr.mxu0 0.0
    %360 = vmatpush1.msra.mxu0 0.0
    %361 = vmatprep.subr.mxu0 0.0
    %362 = vmatpush1.msra.mxu0 0.0
    %363 = vmatprep.subr.mxu0 0.0
    %364 = vmatpush1.msra.mxu0 0.0
    %365 = vmatprep.subr.mxu0 0.0
    %366 = vmatpush1.msra.mxu0 0.0
    %367 = vmatprep.subr.mxu0 0.0
    %368 = vmatpush1.msra.mxu0 0.0
    %369 = vmatprep.subr.mxu0 0.0
    %370 = vmatpush1.msra.mxu0 0.0
    %371 = vmatprep.subr.mxu0 0.0
    %372 = vmatpush1.msra.mxu0 0.0
    %373 = vmatprep.subr.mxu0 0.0
    %374 = vmatpush1.msra.mxu0 0.0
    %375 = vmatprep.subr.mxu0 %v210
    %376 = vmatpush1.msra.mxu0 %v209
    %377 = vmatprep.subr.mxu0 %v208
    %378 = vmatpush1.msra.mxu0 %v207
    %379 = vmatprep.subr.mxu0 %v206
    %380 = vmatpush1.msra.mxu0 %v205
    %381 = vmatprep.subr.mxu0 %v204
    %382 = vmatpush1.msra.mxu0 %v203
    %383 = vmatprep.subr.mxu0 %v202
    %384 = vmatpush1.msra.mxu0 %v201
    %385 = vmatprep.subr.mxu0 %v200
    %386 = vmatpush1.msra.mxu0 %v199
    %387 = vmatprep.subr.mxu0 %v198
    %388 = vmatpush1.msra.mxu0 %v197
    %389 = vmatprep.subr.mxu0 %v196
    %390 = vmatpush1.msra.mxu0 %v195
    %391 = vmatprep.subr.mxu0 0.0
    %392 = vmatpush2.msra.mxu0 0.0
    %393 = vmatprep.subr.mxu0 0.0
    %394 = vmatpush2.msra.mxu0 0.0
    %395 = vmatprep.subr.mxu0 0.0
    %396 = vmatpush2.msra.mxu0 0.0
    %397 = vmatprep.subr.mxu0 0.0
    %398 = vmatpush2.msra.mxu0 0.0
    %399 = vmatprep.subr.mxu0 0.0
    %400 = vmatpush2.msra.mxu0 0.0
    %401 = vmatprep.subr.mxu0 0.0
    %402 = vmatpush2.msra.mxu0 0.0
    %403 = vmatprep.subr.mxu0 0.0
    %404 = vmatpush2.msra.mxu0 0.0
    %405 = vmatprep.subr.mxu0 0.0
    %406 = vmatpush2.msra.mxu0 0.0
    %407 = vmatprep.subr.mxu0 0.0
    %408 = vmatpush2.msra.mxu0 0.0
    %409 = vmatprep.subr.mxu0 0.0
    %410 = vmatpush2.msra.mxu0 0.0
    %411 = vmatprep.subr.mxu0 0.0
    %412 = vmatpush2.msra.mxu0 0.0
    %413 = vmatprep.subr.mxu0 0.0
    %414 = vmatpush2.msra.mxu0 0.0
    %415 = vmatprep.subr.mxu0 0.0
    %416 = vmatpush2.msra.mxu0 0.0
    %417 = vmatprep.subr.mxu0 0.0
    %418 = vmatpush2.msra.mxu0 0.0
    %419 = vmatprep.subr.mxu0 0.0
    %420 = vmatpush2.msra.mxu0 0.0
    %421 = vmatprep.subr.mxu0 0.0
    %422 = vmatpush2.msra.mxu0 0.0
    %423 = vmatprep.mubr.f32.mxu0 0.0
    %424 = vmatmul.mubr.f32.gmra.mxu0 %v357
    %v425 = vpop.f32.mrf.mxu0
    %v426 = vadd.f32 0.0, %v425
    %v427 = vpop.f32.mrf.mxu0
    %v428 = vadd.f32 0.0, %v427
    %429 = vdwg.mxu0
    %v431 = vrot.slane %v426, 6
    %v433 = vadd.f32 %v173, %v431
    %v434 = vxor.u32 %v433, 2147483648
    %v435 = vmul.f32 %v434, 1.442695
    %v436 = vpow.pop %v435
    %v437 = vadd.f32 %v436, 1.0
    %v438 = vrcp.pop %v437
    %v439 = vmul.f32 1.0, %v438
    %v440 = vadd.f32 %v428, %v216
    %v442 = vrot.slane %v440, 6
    %v444 = vmul.f32 %v439, %v442
    %v445 = vadd.f32 %v174, %v444
    %v446 = vtanh.pop %v445
    %v447 = vsub.f32 1.0, %v439
    %449 = vrot.lane.b32.xlu0 %v446, 64
    %v450 = vpop.permute.xlu0 %449
    %v452 = vmul.f32 %v447, %v450
    %v453 = vrot.slane %v346, 2
    %v455 = vmul.f32 %v439, %v453
    %v456 = vadd.f32 %v452, %v455
    %458 = vrot.lane.b32.xlu0 %v456, 64
    %v459 = vpop.permute.xlu0 %458
    %s461 = scalar_lea.vmem %s5, 4
    %vm462 = vcmask 519170
    %463 = vst.msk [vmem:[%s461 - $0x2] sm:$0xc] %vm462, %v459
    %v464 = vrot.slane %v456, 2
    %465 = vrot.lane.b32.xlu0 %v464, 64
    %v466 = vpop.permute.xlu0 %465
    %v467 = vsel %vm246, %v466, 0
    %469 = vmatprep.subr.mxu0 0.0
    %470 = vmatpush1.msra.mxu0 0.0
    %471 = vmatprep.subr.mxu0 0.0
    %472 = vmatpush1.msra.mxu0 0.0
    %473 = vmatprep.subr.mxu0 0.0
    %474 = vmatpush1.msra.mxu0 0.0
    %475 = vmatprep.subr.mxu0 0.0
    %476 = vmatpush1.msra.mxu0 0.0
    %477 = vmatprep.subr.mxu0 0.0
    %478 = vmatpush1.msra.mxu0 0.0
    %479 = vmatprep.subr.mxu0 0.0
    %480 = vmatpush1.msra.mxu0 0.0
    %481 = vmatprep.subr.mxu0 0.0
    %482 = vmatpush1.msra.mxu0 0.0
    %483 = vmatprep.subr.mxu0 0.0
    %484 = vmatpush1.msra.mxu0 0.0
    %485 = vmatprep.subr.mxu0 %v210
    %486 = vmatpush1.msra.mxu0 %v209
    %487 = vmatprep.subr.mxu0 %v208
    %488 = vmatpush1.msra.mxu0 %v207
    %489 = vmatprep.subr.mxu0 %v206
    %490 = vmatpush1.msra.mxu0 %v205
    %491 = vmatprep.subr.mxu0 %v204
    %492 = vmatpush1.msra.mxu0 %v203
    %493 = vmatprep.subr.mxu0 %v202
    %494 = vmatpush1.msra.mxu0 %v201
    %495 = vmatprep.subr.mxu0 %v200
    %496 = vmatpush1.msra.mxu0 %v199
    %497 = vmatprep.subr.mxu0 %v198
    %498 = vmatpush1.msra.mxu0 %v197
    %499 = vmatprep.subr.mxu0 %v196
    %500 = vmatpush1.msra.mxu0 %v195
    %501 = vmatprep.subr.mxu0 0.0
    %502 = vmatpush2.msra.mxu0 0.0
    %503 = vmatprep.subr.mxu0 0.0
    %504 = vmatpush2.msra.mxu0 0.0
    %505 = vmatprep.subr.mxu0 0.0
    %506 = vmatpush2.msra.mxu0 0.0
    %507 = vmatprep.subr.mxu0 0.0
    %508 = vmatpush2.msra.mxu0 0.0
    %509 = vmatprep.subr.mxu0 0.0
    %510 = vmatpush2.msra.mxu0 0.0
    %511 = vmatprep.subr.mxu0 0.0
    %512 = vmatpush2.msra.mxu0 0.0
    %513 = vmatprep.subr.mxu0 0.0
    %514 = vmatpush2.msra.mxu0 0.0
    %515 = vmatprep.subr.mxu0 0.0
    %516 = vmatpush2.msra.mxu0 0.0
    %517 = vmatprep.subr.mxu0 0.0
    %518 = vmatpush2.msra.mxu0 0.0
    %519 = vmatprep.subr.mxu0 0.0
    %520 = vmatpush2.msra.mxu0 0.0
    %521 = vmatprep.subr.mxu0 0.0
    %522 = vmatpush2.msra.mxu0 0.0
    %523 = vmatprep.subr.mxu0 0.0
    %524 = vmatpush2.msra.mxu0 0.0
    %525 = vmatprep.subr.mxu0 0.0
    %526 = vmatpush2.msra.mxu0 0.0
    %527 = vmatprep.subr.mxu0 0.0
    %528 = vmatpush2.msra.mxu0 0.0
    %529 = vmatprep.subr.mxu0 0.0
    %530 = vmatpush2.msra.mxu0 0.0
    %531 = vmatprep.subr.mxu0 0.0
    %532 = vmatpush2.msra.mxu0 0.0
    %533 = vmatprep.mubr.f32.mxu0 0.0
    %534 = vmatmul.mubr.f32.gmra.mxu0 %v467
    %v535 = vpop.f32.mrf.mxu0
    %v536 = vadd.f32 0.0, %v535
    %v537 = vpop.f32.mrf.mxu0
    %v538 = vadd.f32 0.0, %v537
    %539 = vdwg.mxu0
    %v540 = vadd.f32 %v179, %v536
    %v541 = vxor.u32 %v540, 2147483648
    %v542 = vmul.f32 %v541, 1.442695
    %v543 = vpow.pop %v542
    %v544 = vadd.f32 %v543, 1.0
    %v545 = vrcp.pop %v544
    %v546 = vmul.f32 1.0, %v545
    %v547 = vadd.f32 %v538, %v216
    %v548 = vmul.f32 %v546, %v547
    %v549 = vadd.f32 %v180, %v548
    %v550 = vtanh.pop %v549
    %v551 = vsub.f32 1.0, %v546
    %553 = vrot.lane.b32.xlu0 %v550, 64
    %v554 = vpop.permute.xlu0 %553
    %v556 = vmul.f32 %v551, %v554
    %v558 = vmul.f32 %v546, %v464
    %v559 = vadd.f32 %v556, %v558
    %561 = vrot.lane.b32.xlu0 %v559, 64
    %v562 = vpop.permute.xlu0 %561
    %s564 = scalar_lea.vmem %s5, 6
    %vm565 = vcmask 517120
    %566 = vst.msk [vmem:[%s564] sm:$0x3] %vm565, %v562
    %v567 = vsel %vm246, %v562, 0
    %569 = vmatprep.subr.mxu0 0.0
    %570 = vmatpush1.msra.mxu0 0.0
    %571 = vmatprep.subr.mxu0 0.0
    %572 = vmatpush1.msra.mxu0 0.0
    %573 = vmatprep.subr.mxu0 0.0
    %574 = vmatpush1.msra.mxu0 0.0
    %575 = vmatprep.subr.mxu0 0.0
    %576 = vmatpush1.msra.mxu0 0.0
    %577 = vmatprep.subr.mxu0 0.0
    %578 = vmatpush1.msra.mxu0 0.0
    %579 = vmatprep.subr.mxu0 0.0
    %580 = vmatpush1.msra.mxu0 0.0
    %581 = vmatprep.subr.mxu0 0.0
    %582 = vmatpush1.msra.mxu0 0.0
    %583 = vmatprep.subr.mxu0 0.0
    %584 = vmatpush1.msra.mxu0 0.0
    %585 = vmatprep.subr.mxu0 %v210
    %586 = vmatpush1.msra.mxu0 %v209
    %587 = vmatprep.subr.mxu0 %v208
    %588 = vmatpush1.msra.mxu0 %v207
    %589 = vmatprep.subr.mxu0 %v206
    %590 = vmatpush1.msra.mxu0 %v205
    %591 = vmatprep.subr.mxu0 %v204
    %592 = vmatpush1.msra.mxu0 %v203
    %593 = vmatprep.subr.mxu0 %v202
    %594 = vmatpush1.msra.mxu0 %v201
    %595 = vmatprep.subr.mxu0 %v200
    %596 = vmatpush1.msra.mxu0 %v199
    %597 = vmatprep.subr.mxu0 %v198
    %598 = vmatpush1.msra.mxu0 %v197
    %599 = vmatprep.subr.mxu0 %v196
    %600 = vmatpush1.msra.mxu0 %v195
    %601 = vmatprep.subr.mxu0 0.0
    %602 = vmatpush2.msra.mxu0 0.0
    %603 = vmatprep.subr.mxu0 0.0
    %604 = vmatpush2.msra.mxu0 0.0
    %605 = vmatprep.subr.mxu0 0.0
    %606 = vmatpush2.msra.mxu0 0.0
    %607 = vmatprep.subr.mxu0 0.0
    %608 = vmatpush2.msra.mxu0 0.0
    %609 = vmatprep.subr.mxu0 0.0
    %610 = vmatpush2.msra.mxu0 0.0
    %611 = vmatprep.subr.mxu0 0.0
    %612 = vmatpush2.msra.mxu0 0.0
    %613 = vmatprep.subr.mxu0 0.0
    %614 = vmatpush2.msra.mxu0 0.0
    %615 = vmatprep.subr.mxu0 0.0
    %616 = vmatpush2.msra.mxu0 0.0
    %617 = vmatprep.subr.mxu0 0.0
    %618 = vmatpush2.msra.mxu0 0.0
    %619 = vmatprep.subr.mxu0 0.0
    %620 = vmatpush2.msra.mxu0 0.0
    %621 = vmatprep.subr.mxu0 0.0
    %622 = vmatpush2.msra.mxu0 0.0
    %623 = vmatprep.subr.mxu0 0.0
    %624 = vmatpush2.msra.mxu0 0.0
    %625 = vmatprep.subr.mxu0 0.0
    %626 = vmatpush2.msra.mxu0 0.0
    %627 = vmatprep.subr.mxu0 0.0
    %628 = vmatpush2.msra.mxu0 0.0
    %629 = vmatprep.subr.mxu0 0.0
    %630 = vmatpush2.msra.mxu0 0.0
    %631 = vmatprep.subr.mxu0 0.0
    %632 = vmatpush2.msra.mxu0 0.0
    %633 = vmatprep.mubr.f32.mxu0 0.0
    %634 = vmatmul.mubr.f32.gmra.mxu0 %v567
    %v635 = vpop.f32.mrf.mxu0
    %v636 = vadd.f32 0.0, %v635
    %v637 = vpop.f32.mrf.mxu0
    %v638 = vadd.f32 0.0, %v637
    %639 = vdwg.mxu0
    %v641 = vrot.slane %v636, 2
    %v643 = vadd.f32 %v187, %v641
    %v644 = vxor.u32 %v643, 2147483648
    %v645 = vmul.f32 %v644, 1.442695
    %v646 = vpow.pop %v645
    %v647 = vadd.f32 %v646, 1.0
    %v648 = vrcp.pop %v647
    %v649 = vmul.f32 1.0, %v648
    %v650 = vadd.f32 %v638, %v216
    %v652 = vrot.slane %v650, 2
    %v654 = vmul.f32 %v649, %v652
    %v655 = vadd.f32 %v188, %v654
    %v656 = vtanh.pop %v655
    %v657 = vsub.f32 1.0, %v649
    %659 = vrot.lane.b32.xlu0 %v656, 64
    %v660 = vpop.permute.xlu0 %659
    %v662 = vmul.f32 %v657, %v660
    %v663 = vrot.slane %v559, 2
    %v665 = vmul.f32 %v649, %v663
    %v666 = vadd.f32 %v662, %v665
    %668 = vrot.lane.b32.xlu0 %v666, 64
    %v669 = vpop.permute.xlu0 %668
    %s671 = scalar_lea.vmem %s5, 8
    %672 = vst.msk [vmem:[%s671 - $0x6] sm:$0xc0] %vm241, %v669
    %v673 = vrot.slane %v666, 6
    %674 = vrot.lane.b32.xlu0 %v673, 64
    %v675 = vpop.permute.xlu0 %674
    %v676 = vsel %vm246, %v675, 0
    %678 = vmatprep.subr.mxu0 0.0
    %679 = vmatpush1.msra.mxu0 0.0
    %680 = vmatprep.subr.mxu0 0.0
    %681 = vmatpush1.msra.mxu0 0.0
    %682 = vmatprep.subr.mxu0 0.0
    %683 = vmatpush1.msra.mxu0 0.0
    %684 = vmatprep.subr.mxu0 0.0
    %685 = vmatpush1.msra.mxu0 0.0
    %686 = vmatprep.subr.mxu0 0.0
    %687 = vmatpush1.msra.mxu0 0.0
    %688 = vmatprep.subr.mxu0 0.0
    %689 = vmatpush1.msra.mxu0 0.0
    %690 = vmatprep.subr.mxu0 0.0
    %691 = vmatpush1.msra.mxu0 0.0
    %692 = vmatprep.subr.mxu0 0.0
    %693 = vmatpush1.msra.mxu0 0.0
    %694 = vmatprep.subr.mxu0 %v210
    %695 = vmatpush1.msra.mxu0 %v209
    %696 = vmatprep.subr.mxu0 %v208
    %697 = vmatpush1.msra.mxu0 %v207
    %698 = vmatprep.subr.mxu0 %v206
    %699 = vmatpush1.msra.mxu0 %v205
    %700 = vmatprep.subr.mxu0 %v204
    %701 = vmatpush1.msra.mxu0 %v203
    %702 = vmatprep.subr.mxu0 %v202
    %703 = vmatpush1.msra.mxu0 %v201
    %704 = vmatprep.subr.mxu0 %v200
    %705 = vmatpush1.msra.mxu0 %v199
    %706 = vmatprep.subr.mxu0 %v198
    %707 = vmatpush1.msra.mxu0 %v197
    %708 = vmatprep.subr.mxu0 %v196
    %709 = vmatpush1.msra.mxu0 %v195
    %710 = vmatprep.subr.mxu0 0.0
    %711 = vmatpush2.msra.mxu0 0.0
    %712 = vmatprep.subr.mxu0 0.0
    %713 = vmatpush2.msra.mxu0 0.0
    %714 = vmatprep.subr.mxu0 0.0
    %715 = vmatpush2.msra.mxu0 0.0
    %716 = vmatprep.subr.mxu0 0.0
    %717 = vmatpush2.msra.mxu0 0.0
    %718 = vmatprep.subr.mxu0 0.0
    %719 = vmatpush2.msra.mxu0 0.0
    %720 = vmatprep.subr.mxu0 0.0
    %721 = vmatpush2.msra.mxu0 0.0
    %722 = vmatprep.subr.mxu0 0.0
    %723 = vmatpush2.msra.mxu0 0.0
    %724 = vmatprep.subr.mxu0 0.0
    %725 = vmatpush2.msra.mxu0 0.0
    %726 = vmatprep.subr.mxu0 0.0
    %727 = vmatpush2.msra.mxu0 0.0
    %728 = vmatprep.subr.mxu0 0.0
    %729 = vmatpush2.msra.mxu0 0.0
    %730 = vmatprep.subr.mxu0 0.0
    %731 = vmatpush2.msra.mxu0 0.0
    %732 = vmatprep.subr.mxu0 0.0
    %733 = vmatpush2.msra.mxu0 0.0
    %734 = vmatprep.subr.mxu0 0.0
    %735 = vmatpush2.msra.mxu0 0.0
    %736 = vmatprep.subr.mxu0 0.0
    %737 = vmatpush2.msra.mxu0 0.0
    %738 = vmatprep.subr.mxu0 0.0
    %739 = vmatpush2.msra.mxu0 0.0
    %740 = vmatprep.subr.mxu0 0.0
    %741 = vmatpush2.msra.mxu0 0.0
    %742 = vmatprep.mubr.f32.mxu0 0.0
    %743 = vmatmul.mubr.f32.gmra.mxu0 %v676
    %v744 = vpop.f32.mrf.mxu0
    %v745 = vadd.f32 0.0, %v744
    %v746 = vpop.f32.mrf.mxu0
    %v747 = vadd.f32 0.0, %v746
    %748 = vdwg.mxu0
    %v750 = vrot.slane %v745, 4
    %v752 = vadd.f32 %v193, %v750
    %v753 = vxor.u32 %v752, 2147483648
    %v754 = vmul.f32 %v753, 1.442695
    %v755 = vpow.pop %v754
    %v756 = vadd.f32 %v755, 1.0
    %v757 = vrcp.pop %v756
    %v758 = vmul.f32 1.0, %v757
    %v759 = vadd.f32 %v747, %v216
    %v761 = vrot.slane %v759, 4
    %v763 = vmul.f32 %v758, %v761
    %v764 = vadd.f32 %v194, %v763
    %v765 = vtanh.pop %v764
    %v766 = vsub.f32 1.0, %v758
    %768 = vrot.lane.b32.xlu0 %v765, 64
    %v769 = vpop.permute.xlu0 %768
    %v771 = vmul.f32 %v766, %v769
    %v772 = vrot.slane %v666, 2
    %v774 = vmul.f32 %v758, %v772
    %v775 = vadd.f32 %v771, %v774
    %777 = vrot.lane.b32.xlu0 %v775, 64
    %v778 = vpop.permute.xlu0 %777
    %s780 = scalar_lea.vmem %s5, 10
    %781 = vst.msk [vmem:[%s780 - $0x4] sm:$0x30] %vm352, %v778
    %v782 = vrot.slane %v775, 4
    %783 = vrot.lane.b32.xlu0 %v782, 64
    %v784 = vpop.permute.xlu0 %783
    %v785 = vsel %vm246, %v784, 0
    %787 = vmatprep.subr.mxu0 0.0
    %788 = vmatpush1.msra.mxu0 0.0
    %789 = vmatprep.subr.mxu0 0.0
    %790 = vmatpush1.msra.mxu0 0.0
    %791 = vmatprep.subr.mxu0 0.0
    %792 = vmatpush1.msra.mxu0 0.0
    %793 = vmatprep.subr.mxu0 0.0
    %794 = vmatpush1.msra.mxu0 0.0
    %795 = vmatprep.subr.mxu0 0.0
    %796 = vmatpush1.msra.mxu0 0.0
    %797 = vmatprep.subr.mxu0 0.0
    %798 = vmatpush1.msra.mxu0 0.0
    %799 = vmatprep.subr.mxu0 0.0
    %800 = vmatpush1.msra.mxu0 0.0
    %801 = vmatprep.subr.mxu0 0.0
    %802 = vmatpush1.msra.mxu0 0.0
    %803 = vmatprep.subr.mxu0 %v210
    %804 = vmatpush1.msra.mxu0 %v209
    %805 = vmatprep.subr.mxu0 %v208
    %806 = vmatpush1.msra.mxu0 %v207
    %807 = vmatprep.subr.mxu0 %v206
    %808 = vmatpush1.msra.mxu0 %v205
    %809 = vmatprep.subr.mxu0 %v204
    %810 = vmatpush1.msra.mxu0 %v203
    %811 = vmatprep.subr.mxu0 %v202
    %812 = vmatpush1.msra.mxu0 %v201
    %813 = vmatprep.subr.mxu0 %v200
    %814 = vmatpush1.msra.mxu0 %v199
    %815 = vmatprep.subr.mxu0 %v198
    %816 = vmatpush1.msra.mxu0 %v197
    %817 = vmatprep.subr.mxu0 %v196
    %818 = vmatpush1.msra.mxu0 %v195
    %819 = vmatprep.subr.mxu0 0.0
    %820 = vmatpush2.msra.mxu0 0.0
    %821 = vmatprep.subr.mxu0 0.0
    %822 = vmatpush2.msra.mxu0 0.0
    %823 = vmatprep.subr.mxu0 0.0
    %824 = vmatpush2.msra.mxu0 0.0
    %825 = vmatprep.subr.mxu0 0.0
    %826 = vmatpush2.msra.mxu0 0.0
    %827 = vmatprep.subr.mxu0 0.0
    %828 = vmatpush2.msra.mxu0 0.0
    %829 = vmatprep.subr.mxu0 0.0
    %830 = vmatpush2.msra.mxu0 0.0
    %831 = vmatprep.subr.mxu0 0.0
    %832 = vmatpush2.msra.mxu0 0.0
    %833 = vmatprep.subr.mxu0 0.0
    %834 = vmatpush2.msra.mxu0 0.0
    %835 = vmatprep.subr.mxu0 0.0
    %836 = vmatpush2.msra.mxu0 0.0
    %837 = vmatprep.subr.mxu0 0.0
    %838 = vmatpush2.msra.mxu0 0.0
    %839 = vmatprep.subr.mxu0 0.0
    %840 = vmatpush2.msra.mxu0 0.0
    %841 = vmatprep.subr.mxu0 0.0
    %842 = vmatpush2.msra.mxu0 0.0
    %843 = vmatprep.subr.mxu0 0.0
    %844 = vmatpush2.msra.mxu0 0.0
    %845 = vmatprep.subr.mxu0 0.0
    %846 = vmatpush2.msra.mxu0 0.0
    %847 = vmatprep.subr.mxu0 0.0
    %848 = vmatpush2.msra.mxu0 0.0
    %849 = vmatprep.subr.mxu0 0.0
    %850 = vmatpush2.msra.mxu0 0.0
    %851 = vmatprep.mubr.f32.mxu0 0.0
    %852 = vmatmul.mubr.f32.gmra.mxu0 %v785
    %v853 = vpop.f32.mrf.mxu0
    %v854 = vadd.f32 0.0, %v853
    %v855 = vpop.f32.mrf.mxu0
    %v856 = vadd.f32 0.0, %v855
    %857 = vdwg.mxu0
    %v859 = vrot.slane %v854, 6
    %v861 = vadd.f32 %v187, %v859
    %v862 = vxor.u32 %v861, 2147483648
    %v863 = vmul.f32 %v862, 1.442695
    %v864 = vpow.pop %v863
    %v865 = vadd.f32 %v864, 1.0
    %v866 = vrcp.pop %v865
    %v867 = vmul.f32 1.0, %v866
    %v868 = vadd.f32 %v856, %v216
    %v870 = vrot.slane %v868, 6
    %v872 = vmul.f32 %v867, %v870
    %v873 = vadd.f32 %v188, %v872
    %v874 = vtanh.pop %v873
    %v875 = vsub.f32 1.0, %v867
    %877 = vrot.lane.b32.xlu0 %v874, 64
    %v878 = vpop.permute.xlu0 %877
    %v880 = vmul.f32 %v875, %v878
    %v881 = vrot.slane %v775, 2
    %v883 = vmul.f32 %v867, %v881
    %v884 = vadd.f32 %v880, %v883
    %886 = vrot.lane.b32.xlu0 %v884, 64
    %v887 = vpop.permute.xlu0 %886
    %s889 = scalar_lea.vmem %s5, 12
    %890 = vst.msk [vmem:[%s889 - $0x2] sm:$0xc] %vm462, %v887
    %v891 = vrot.slane %v884, 2
    %892 = vrot.lane.b32.xlu0 %v891, 64
    %v893 = vpop.permute.xlu0 %892
    %v894 = vsel %vm246, %v893, 0
    %896 = vmatprep.subr.mxu0 0.0
    %897 = vmatpush1.msra.mxu0 0.0
    %898 = vmatprep.subr.mxu0 0.0
    %899 = vmatpush1.msra.mxu0 0.0
    %900 = vmatprep.subr.mxu0 0.0
    %901 = vmatpush1.msra.mxu0 0.0
    %902 = vmatprep.subr.mxu0 0.0
    %903 = vmatpush1.msra.mxu0 0.0
    %904 = vmatprep.subr.mxu0 0.0
    %905 = vmatpush1.msra.mxu0 0.0
    %906 = vmatprep.subr.mxu0 0.0
    %907 = vmatpush1.msra.mxu0 0.0
    %908 = vmatprep.subr.mxu0 0.0
    %909 = vmatpush1.msra.mxu0 0.0
    %910 = vmatprep.subr.mxu0 0.0
    %911 = vmatpush1.msra.mxu0 0.0
    %912 = vmatprep.subr.mxu0 %v210
    %913 = vmatpush1.msra.mxu0 %v209
    %914 = vmatprep.subr.mxu0 %v208
    %915 = vmatpush1.msra.mxu0 %v207
    %916 = vmatprep.subr.mxu0 %v206
    %917 = vmatpush1.msra.mxu0 %v205
    %918 = vmatprep.subr.mxu0 %v204
    %919 = vmatpush1.msra.mxu0 %v203
    %920 = vmatprep.subr.mxu0 %v202
    %921 = vmatpush1.msra.mxu0 %v201
    %922 = vmatprep.subr.mxu0 %v200
    %923 = vmatpush1.msra.mxu0 %v199
    %924 = vmatprep.subr.mxu0 %v198
    %925 = vmatpush1.msra.mxu0 %v197
    %926 = vmatprep.subr.mxu0 %v196
    %927 = vmatpush1.msra.mxu0 %v195
    %928 = vmatprep.subr.mxu0 0.0
    %929 = vmatpush2.msra.mxu0 0.0
    %930 = vmatprep.subr.mxu0 0.0
    %931 = vmatpush2.msra.mxu0 0.0
    %932 = vmatprep.subr.mxu0 0.0
    %933 = vmatpush2.msra.mxu0 0.0
    %934 = vmatprep.subr.mxu0 0.0
    %935 = vmatpush2.msra.mxu0 0.0
    %936 = vmatprep.subr.mxu0 0.0
    %937 = vmatpush2.msra.mxu0 0.0
    %938 = vmatprep.subr.mxu0 0.0
    %939 = vmatpush2.msra.mxu0 0.0
    %940 = vmatprep.subr.mxu0 0.0
    %941 = vmatpush2.msra.mxu0 0.0
    %942 = vmatprep.subr.mxu0 0.0
    %943 = vmatpush2.msra.mxu0 0.0
    %944 = vmatprep.subr.mxu0 0.0
    %945 = vmatpush2.msra.mxu0 0.0
    %946 = vmatprep.subr.mxu0 0.0
    %947 = vmatpush2.msra.mxu0 0.0
    %948 = vmatprep.subr.mxu0 0.0
    %949 = vmatpush2.msra.mxu0 0.0
    %950 = vmatprep.subr.mxu0 0.0
    %951 = vmatpush2.msra.mxu0 0.0
    %952 = vmatprep.subr.mxu0 0.0
    %953 = vmatpush2.msra.mxu0 0.0
    %954 = vmatprep.subr.mxu0 0.0
    %955 = vmatpush2.msra.mxu0 0.0
    %956 = vmatprep.subr.mxu0 0.0
    %957 = vmatpush2.msra.mxu0 0.0
    %958 = vmatprep.subr.mxu0 0.0
    %959 = vmatpush2.msra.mxu0 0.0
    %960 = vmatprep.mubr.f32.mxu0 0.0
    %961 = vmatmul.mubr.f32.gmra.mxu0 %v894
    %v962 = vpop.f32.mrf.mxu0
    %v963 = vadd.f32 0.0, %v962
    %v964 = vpop.f32.mrf.mxu0
    %v965 = vadd.f32 0.0, %v964
    %966 = vdwg.mxu0
    %v967 = vadd.f32 %v193, %v963
    %v968 = vxor.u32 %v967, 2147483648
    %v969 = vmul.f32 %v968, 1.442695
    %v970 = vpow.pop %v969
    %v971 = vadd.f32 %v970, 1.0
    %v972 = vrcp.pop %v971
    %v973 = vmul.f32 1.0, %v972
    %v974 = vadd.f32 %v965, %v216
    %v975 = vmul.f32 %v973, %v974
    %v976 = vadd.f32 %v194, %v975
    %v977 = vtanh.pop %v976
    %v978 = vsub.f32 1.0, %v973
    %980 = vrot.lane.b32.xlu0 %v977, 64
    %v981 = vpop.permute.xlu0 %980
    %v983 = vmul.f32 %v978, %v981
    %v985 = vmul.f32 %v973, %v891
    %v986 = vadd.f32 %v983, %v985
    %988 = vrot.lane.b32.xlu0 %v986, 64
    %v989 = vpop.permute.xlu0 %988
    %s991 = scalar_lea.vmem %s5, 14
    %992 = vst.msk [vmem:[%s991] sm:$0x3] %vm565, %v989
    %993 = vst.msk [vmem:[%s6] sm:$0x3] %vm565, %v989
    // Predicated region
    $region26: #{encode_birnn_forward.1} parent=1 // pred_check
      _
    $region27: #{encode_birnn_forward.1} parent=1 // pred_check_branch
      %995 = sbr.rel (0) target = $region29
    $region28: #{encode_birnn_forward.1} parent=1 // pred_region
      _
    $region29: #{encode_birnn_forward.1} parent=1 // pred_fallthru
      _
    // Predicated region
    $region30: #{encode_birnn_forward.1} parent=1 // pred_check
      _
    $region31: #{encode_birnn_forward.1} parent=1 // pred_check_branch
      %997 = sbr.rel (0) target = $region33
    $region32: #{encode_birnn_forward.1} parent=1 // pred_region
      _
    $region33: #{encode_birnn_forward.1} parent=1 // pred_fallthru
      _
    // Predicated region
    $region34: #{encode_birnn_forward.1} parent=1 // pred_check
      _
    $region35: #{encode_birnn_forward.1} parent=1 // pred_check_branch
      %999 = sbr.rel (0) target = $region37
    $region36: #{encode_birnn_forward.1} parent=1 // pred_region
      _
    $region37: #{encode_birnn_forward.1} parent=1 // pred_fallthru
      _
    // Predicated region
    $region38: #{encode_birnn_forward.1} parent=1 // pred_check
      _
    $region39: #{encode_birnn_forward.1} parent=1 // pred_check_branch
      %1001 = sbr.rel (0) target = $region41
    $region40: #{encode_birnn_forward.1} parent=1 // pred_region
      _
    $region41: #{encode_birnn_forward.1} parent=1 // pred_fallthru
      _
    %1002 = vsyncpa [#allocation3], 1

</llo_original>
